<compile_context>
chip_gen: v7x
topology: tpu7x:2x2x1
jax: 0.10.0
libtpu: 0.0.40
codegen_flags: <defaults>
</compile_context>

<pallas_src>
import functools

import jax
import jax.numpy as jnp
from jax.experimental import pallas as pl
from jax.experimental.pallas import tpu as pltpu

_LANE = 128
_BF16_SUBLANE = 16


# ----------------------------------------------------------------------------
# Small helpers
# ----------------------------------------------------------------------------
def _cdiv(a, b):
    return -(-a // b)


def _rup(n, m):
    return _cdiv(n, m) * m


def _pad_to(x, axis, target):
    pad = target - x.shape[axis]
    if pad == 0:
        return x
    widths = [(0, 0)] * x.ndim
    widths[axis] = (0, pad)
    return jnp.pad(x, widths)


@functools.lru_cache(maxsize=None)
def _num_tensorcores():
    """2 TensorCores per chip on v7x-class devices, 1 on v5e/v6e."""
    devs = jax.devices()
    if not devs:
        return 1
    kind = getattr(devs[0], "device_kind", "").lower()
    return 2 if ("v7" in kind or "7x" in kind) else 1


def _probe_kernel(x_ref, w_ref, o_ref):
    o_ref[...] = x_ref[...] + w_ref[...]


@functools.lru_cache(maxsize=None)
def _buffered_weights_supported():
    """One-time, cached feature probe: can this jax/Mosaic lower
    pl.BlockSpec(..., pipeline_mode=pl.Buffered(1)) for grid-invariant
    operands?  Result is reused for every forward call."""
    if not hasattr(pl, "Buffered"):
        return False
    try:
        fn = pl.pallas_call(
            _probe_kernel,
            out_shape=jax.ShapeDtypeStruct((16, 128), jnp.float32),
            grid=(2,),
            in_specs=[
                pl.BlockSpec((8, 128), lambda i: (i, 0)),
                pl.BlockSpec((8, 128), lambda i: (0, 0),
                             pipeline_mode=pl.Buffered(1)),
            ],
            out_specs=pl.BlockSpec((8, 128), lambda i: (i, 0)),
        )
        jax.jit(fn).lower(
            jnp.zeros((16, 128), jnp.float32),
            jnp.zeros((8, 128), jnp.float32),
        ).compile()
        return True
    except Exception:
        # Narrow-purpose probe: only gates the pipeline_mode feature; the real
        # kernel path never swallows errors.
        return False


# ----------------------------------------------------------------------------
# Kernel
# ----------------------------------------------------------------------------
def _bmn_ddi_kernel(x_ref,
                    fe_w0, fe_b0, fe_w1, fe_b1,
                    c_w0a, c_w0b, c_b0,
                    c_w1, c_b1,
                    c_w2, c_b2,
                    out_ref):
    """Fused BMNDDI.bmn_basic forward for one batch tile.

    x_ref holds both drugs pre-stacked along sublanes: rows [0, bm) are drug A
    of this tile, rows [bm, 2*bm) are drug B, so the feature extractor runs as
    one matmul pair with 2x MXU row fill and a single input DMA stream.
    """
    bm = out_ref.shape[0]

    # --- drug_feature_extractor (FCNet: Linear+ReLU, Linear+ReLU) ----------
    x = x_ref[...]                                                  # (2*bm, D)
    h = jnp.dot(x, fe_w0[...], preferred_element_type=jnp.float32) + fe_b0[...]
    h = jnp.maximum(h, 0.0).astype(fe_w1.dtype)
    f = jnp.dot(h, fe_w1[...], preferred_element_type=jnp.float32) + fe_b1[...]
    f = jnp.maximum(f, 0.0).astype(c_w0a.dtype)                     # (2*bm, F)

    f1 = f[:bm]                                                     # features_drug1
    f2 = f[bm:]                                                     # features_drug2

    # --- fusion_layer(mode='concat') + classifier layer 0 (ReLU) -----------
    # TODO(synk): on v6e/v7x a single K=2F matmul (lane-concat of f1,f2) would
    # fill the 256-deep MXU; kept as split K matmuls for a single portable path.
    h = (jnp.dot(f1, c_w0a[...], preferred_element_type=jnp.float32)
         + jnp.dot(f2, c_w0b[...], preferred_element_type=jnp.float32)
         + c_b0[...])
    h = jnp.maximum(h, 0.0).astype(c_w1.dtype)

    # --- classifier layer 1 (ReLU) ------------------------------------------
    h = jnp.dot(h, c_w1[...], preferred_element_type=jnp.float32) + c_b1[...]
    h = jnp.maximum(h, 0.0).astype(c_w2.dtype)

    # --- classifier output layer + Sigmoid ----------------------------------
    logits = jnp.dot(h, c_w2[...], preferred_element_type=jnp.float32) + c_b2[...]
    out_ref[...] = jax.nn.sigmoid(logits).astype(out_ref.dtype)


# ----------------------------------------------------------------------------
# One-time parameter preparation (hoisted out of the per-call path)
# ----------------------------------------------------------------------------
def prepare_params(params, compute_dtype=jnp.bfloat16):
    """Pad every feature dim to a multiple of 128 lanes and cast matmul
    operands to the compute dtype (biases stay f32, added to the f32
    accumulator).  Zero padding is exact: ReLU(0)=0 and zero weight rows/cols
    contribute nothing.  Call once; reuse the result for every forward."""
    fe_w0, fe_b0, fe_w1, fe_b1, c_w0, c_b0, c_w1, c_b1, c_w2, c_b2 = params
    D_in, H_FE = fe_w0.shape
    F_FE = fe_w1.shape[1]
    C0, C1 = c_w1.shape
    nb_se = c_w2.shape[1]

    D_p, H_p, F_p = _rup(D_in, _LANE), _rup(H_FE, _LANE), _rup(F_FE, _LANE)
    C0_p, C1_p, O_p = _rup(C0, _LANE), _rup(C1, _LANE), _rup(nb_se, _LANE)
    cd = compute_dtype

    prepared = (
        _pad_to(_pad_to(fe_w0, 0, D_p), 1, H_p).astype(cd),
        _pad_to(fe_b0, 1, H_p).astype(jnp.float32),
        _pad_to(_pad_to(fe_w1, 0, H_p), 1, F_p).astype(cd),
        _pad_to(fe_b1, 1, F_p).astype(jnp.float32),
        _pad_to(_pad_to(c_w0[:F_FE], 0, F_p), 1, C0_p).astype(cd),   # concat split (exact)
        _pad_to(_pad_to(c_w0[F_FE:], 0, F_p), 1, C0_p).astype(cd),
        _pad_to(c_b0, 1, C0_p).astype(jnp.float32),
        _pad_to(_pad_to(c_w1, 0, C0_p), 1, C1_p).astype(cd),
        _pad_to(c_b1, 1, C1_p).astype(jnp.float32),
        _pad_to(_pad_to(c_w2, 0, C1_p), 1, O_p).astype(cd),
        _pad_to(c_b2, 1, O_p).astype(jnp.float32),
    )
    prepared = tuple(jax.device_put(w) for w in prepared)
    return prepared, int(nb_se)


# ----------------------------------------------------------------------------
# Forward (jit'd; pallas_call is the only meaningful per-call cost)
# ----------------------------------------------------------------------------
@functools.partial(
    jax.jit,
    static_argnames=("nb_se", "block_m", "compute_dtype", "use_buffered", "num_tc"))
def _bmn_ddi_forward_impl(drugs_a, drugs_b, prepared, *,
                          nb_se, block_m, compute_dtype, use_buffered, num_tc):
    B, _ = drugs_a.shape
    (fe_w0p, fe_b0p, fe_w1p, fe_b1p,
     c_w0a, c_w0b, c_b0p, c_w1p, c_b1p, c_w2p, c_b2p) = prepared
    weight_args = (fe_w0p, fe_b0p, fe_w1p, fe_b1p,
                   c_w0a, c_w0b, c_b0p, c_w1p, c_b1p, c_w2p, c_b2p)

    D_p, H_p = fe_w0p.shape
    F_p = fe_w1p.shape[1]
    C0_p = c_w0a.shape[1]
    C1_p = c_w1p.shape[1]
    O_p = c_w2p.shape[1]

    # Batch tiling: one big tile per TensorCore when possible.  2 tiles only
    # on 2-TC chips (v7x) and only if each tile keeps >= 128 rows.
    n_tiles = max(1, _cdiv(B, block_m))
    if num_tc >= 2:
        if n_tiles == 1 and B >= 2 * _LANE:
            n_tiles = 2
        elif n_tiles > 1:
            n_tiles = _rup(n_tiles, num_tc)
    bm = _rup(_cdiv(B, n_tiles), _BF16_SUBLANE)   # bf16 packed tile = (16,128)
    B_pad = bm * n_tiles

    cd = compute_dtype
    da = _pad_to(_pad_to(drugs_a, 0, B_pad), 1, D_p).astype(cd)
    db = _pad_to(_pad_to(drugs_b, 0, B_pad), 1, D_p).astype(cd)
    # Pre-stack both drugs per tile -> one input array / one DMA stream.
    # Tile i occupies rows [i*2*bm, (i+1)*2*bm): first bm = drug A, next bm = drug B.
    x = jnp.concatenate([da.reshape(n_tiles, bm, D_p),
                         db.reshape(n_tiles, bm, D_p)], axis=1)
    x = x.reshape(n_tiles * 2 * bm, D_p)

    # VMEM budget from the actual footprint (weights single-buffered when the
    # Buffered(1) path is available), capped per generation.
    in_isz = jnp.dtype(cd).itemsize
    w_bytes = sum(int(w.size) * w.dtype.itemsize for w in weight_args)
    w_bytes *= 1 if use_buffered else 2
    tile_bytes = 2 * (2 * bm * D_p * in_isz) + 2 * (bm * O_p * 4)
    interm_bytes = 2 * bm * (H_p + F_p) * 4 + bm * (C0_p + C1_p + O_p) * 4
    vmem_cap = (48 << 20) if num_tc >= 2 else (100 << 20)
    vmem_limit = min(max(int(1.5 * (w_bytes + tile_bytes + interm_bytes)),
                         16 << 20), vmem_cap)

    # Advisory cost estimate for XLA's scheduler around the custom call.
    flops = 2 * (2 * B_pad * (D_p * H_p + H_p * F_p)
                 + B_pad * (2 * F_p * C0_p + C0_p * C1_p + C1_p * O_p))
    bytes_accessed = int(x.size * in_isz
                         + sum(int(w.size) * w.dtype.itemsize for w in weight_args)
                         + B_pad * O_p * 4)
    cost = pl.CostEstimate(flops=int(flops),
                           transcendentals=int(B_pad * O_p),
                           bytes_accessed=bytes_accessed)

    def w_spec(shape):
        idx = lambda i: (0, 0)
        if use_buffered:
            # Grid-invariant weights: single-buffered -> half the weight VMEM.
            return pl.BlockSpec(shape, idx, pipeline_mode=pl.Buffered(1))
        return pl.BlockSpec(shape, idx)

    out_padded = pl.pallas_call(
        _bmn_ddi_kernel,
        out_shape=jax.ShapeDtypeStruct((B_pad, O_p), jnp.float32),
        grid_spec=pltpu.PrefetchScalarGridSpec(
            num_scalar_prefetch=0,
            grid=(n_tiles,),
            in_specs=[pl.BlockSpec((2 * bm, D_p), lambda i: (i, 0))]
                     + [w_spec(w.shape) for w in weight_args],
            out_specs=pl.BlockSpec((bm, O_p), lambda i: (i, 0)),
        ),
        compiler_params=pltpu.CompilerParams(
            dimension_semantics=("parallel",),
            vmem_limit_bytes=vmem_limit),
        cost_estimate=cost,
    )(x, *weight_args)

    return out_padded[:B, :nb_se]


def bmn_ddi_forward(drugs_a, drugs_b, prepared_params, nb_side_effects, *,
                    block_m=1024, compute_dtype=jnp.bfloat16):
    """BMNDDI basic forward (mode='concat').  `prepared_params` comes from
    prepare_params(); call that once and reuse it across calls."""
    return _bmn_ddi_forward_impl(
        drugs_a, drugs_b, prepared_params,
        nb_se=int(nb_side_effects), block_m=int(block_m),
        compute_dtype=compute_dtype,
        use_buffered=_buffered_weights_supported(),
        num_tc=_num_tensorcores())


# ----------------------------------------------------------------------------
# Parameters + pure-JAX reference
# ----------------------------------------------------------------------------
def init_params(key, d_in, h_fe, f_fe, fc_dims, nb_side_effects):
    """Deterministic synthetic parameter init (shapes from BMNDDI.__init__)."""
    ks = jax.random.split(key, 10)
    s = 0.1
    fe_w0 = jax.random.normal(ks[0], (d_in, h_fe), jnp.float32) * s
    fe_b0 = jax.random.normal(ks[1], (1, h_fe), jnp.float32) * s
    fe_w1 = jax.random.normal(ks[2], (h_fe, f_fe), jnp.float32) * s
    fe_b1 = jax.random.normal(ks[3], (1, f_fe), jnp.float32) * s
    in_size = 2 * f_fe                                  # mode='concat'
    c_w0 = jax.random.normal(ks[4], (in_size, fc_dims[0]), jnp.float32) * s
    c_b0 = jax.random.normal(ks[5], (1, fc_dims[0]), jnp.float32) * s
    c_w1 = jax.random.normal(ks[6], (fc_dims[0], fc_dims[1]), jnp.float32) * s
    c_b1 = jax.random.normal(ks[7], (1, fc_dims[1]), jnp.float32) * s
    c_w2 = jax.random.normal(ks[8], (fc_dims[1], nb_side_effects), jnp.float32) * s
    c_b2 = jax.random.normal(ks[9], (1, nb_side_effects), jnp.float32) * s
    return (fe_w0, fe_b0, fe_w1, fe_b1, c_w0, c_b0, c_w1, c_b1, c_w2, c_b2)


def reference_forward(drugs_a, drugs_b, params):
    """Pure-JAX f32 reference mirroring the PyTorch forward (bmn_basic path)."""
    fe_w0, fe_b0, fe_w1, fe_b1, c_w0, c_b0, c_w1, c_b1, c_w2, c_b2 = params

    def fe(x):
        h = jnp.maximum(x @ fe_w0 + fe_b0, 0.0)
        return jnp.maximum(h @ fe_w1 + fe_b1, 0.0)

    f1, f2 = fe(drugs_a), fe(drugs_b)
    ddi = jnp.concatenate([f1, f2], axis=1)             # fusion_layer 'concat'
    h = jnp.maximum(ddi @ c_w0 + c_b0, 0.0)
    h = jnp.maximum(h @ c_w1 + c_b1, 0.0)
    return jax.nn.sigmoid(h @ c_w2 + c_b2)


if __name__ == "__main__":
    # Model shapes kept small (consistent with the module); batch chosen
    # non-divisible by 16 to exercise the padding path.
    B, D_IN, H_FE, F_FE = 200, 32, 64, 64
    FC_DIMS, NB_SE = (64, 32), 16

    key = jax.random.PRNGKey(0)
    k_a, k_b, k_p = jax.random.split(key, 3)
    drugs_a = jax.random.normal(k_a, (B, D_IN), jnp.float32)
    drugs_b = jax.random.normal(k_b, (B, D_IN), jnp.float32)
    params = init_params(k_p, D_IN, H_FE, F_FE, FC_DIMS, NB_SE)

    # One-time weight prep (padding + bf16 cast) hoisted off the hot path.
    prepared, nb_se = prepare_params(params)

    out = bmn_ddi_forward(drugs_a, drugs_b, prepared, nb_se)
    out = jax.block_until_ready(out)

    # Second call exercises the cached (no re-trace / no re-probe) path.
    out = jax.block_until_ready(bmn_ddi_forward(drugs_a, drugs_b, prepared, nb_se))

    ref = reference_forward(drugs_a, drugs_b, params)
    assert out.shape == (B, NB_SE)
    # bf16 MXU operands -> loosened tolerance vs the f32 reference (documented:
    # acceptable for sigmoid outputs / downstream BCE loss).
    max_err = float(jnp.max(jnp.abs(out - ref)))
    assert max_err < 2e-2, f"mismatch vs reference (max abs err {max_err})"

    # TODO(synk): is_binary_output (nn.Embedding side-effect lookup),
    # is_multitask_output (cosine/mnet head), add_feats branch and the
    # pretrained-extractor file loading are not on the basic forward path and
    # are omitted here.
    print("KERNEL_OK")
</pallas_src>

<mosaic_0001>
module attributes {stable_mosaic.version = 11 : i64} {
  func.func @_bmn_ddi_kernel(%arg0: i32, %arg1: memref<416x128xbf16, #tpu.memory_space<vmem>>, %arg2: memref<128x128xbf16, #tpu.memory_space<vmem>>, %arg3: memref<1x128xf32, #tpu.memory_space<vmem>>, %arg4: memref<128x128xbf16, #tpu.memory_space<vmem>>, %arg5: memref<1x128xf32, #tpu.memory_space<vmem>>, %arg6: memref<128x128xbf16, #tpu.memory_space<vmem>>, %arg7: memref<128x128xbf16, #tpu.memory_space<vmem>>, %arg8: memref<1x128xf32, #tpu.memory_space<vmem>>, %arg9: memref<128x128xbf16, #tpu.memory_space<vmem>>, %arg10: memref<1x128xf32, #tpu.memory_space<vmem>>, %arg11: memref<128x128xbf16, #tpu.memory_space<vmem>>, %arg12: memref<1x128xf32, #tpu.memory_space<vmem>>, %arg13: memref<208x128xf32, #tpu.memory_space<vmem>>) attributes {dimension_semantics = [#tpu.dimension_semantics<parallel>], iteration_bounds = array<i64: 1>, scalar_prefetch = 0 : i64, scratch_operands = 0 : i64, tpu.core_type = #tpu.core_type<tc>, window_params = [{transform_indices = @transform_0, window_bounds = array<i64: 416, 128>}, {pipeline_mode = #tpu.pipeline_mode<synchronous>, transform_indices = @transform_1, window_bounds = array<i64: 128, 128>}, {pipeline_mode = #tpu.pipeline_mode<synchronous>, transform_indices = @transform_2, window_bounds = array<i64: 1, 128>}, {pipeline_mode = #tpu.pipeline_mode<synchronous>, transform_indices = @transform_3, window_bounds = array<i64: 128, 128>}, {pipeline_mode = #tpu.pipeline_mode<synchronous>, transform_indices = @transform_4, window_bounds = array<i64: 1, 128>}, {pipeline_mode = #tpu.pipeline_mode<synchronous>, transform_indices = @transform_5, window_bounds = array<i64: 128, 128>}, {pipeline_mode = #tpu.pipeline_mode<synchronous>, transform_indices = @transform_6, window_bounds = array<i64: 128, 128>}, {pipeline_mode = #tpu.pipeline_mode<synchronous>, transform_indices = @transform_7, window_bounds = array<i64: 1, 128>}, {pipeline_mode = #tpu.pipeline_mode<synchronous>, transform_indices = @transform_8, window_bounds = array<i64: 128, 128>}, {pipeline_mode = #tpu.pipeline_mode<synchronous>, transform_indices = @transform_9, window_bounds = array<i64: 1, 128>}, {pipeline_mode = #tpu.pipeline_mode<synchronous>, transform_indices = @transform_10, window_bounds = array<i64: 128, 128>}, {pipeline_mode = #tpu.pipeline_mode<synchronous>, transform_indices = @transform_11, window_bounds = array<i64: 1, 128>}, {transform_indices = @transform_12, window_bounds = array<i64: 208, 128>}]} {
    %c0 = arith.constant 0 : index
    %c0_0 = arith.constant 0 : index
    %0 = vector.load %arg1[%c0, %c0_0] : memref<416x128xbf16, #tpu.memory_space<vmem>>, vector<416x128xbf16>
    %c0_1 = arith.constant 0 : index
    %c0_2 = arith.constant 0 : index
    %1 = vector.load %arg2[%c0_1, %c0_2] : memref<128x128xbf16, #tpu.memory_space<vmem>>, vector<128x128xbf16>
    %cst = arith.constant dense<0.000000e+00> : vector<416x128xf32>
    %2 = tpu.matmul %0, %1, %cst {dimension_numbers = #tpu.dot_dimension_numbers<[1], [0], [0], [1], [0, 0, 1, 1], [], []>} : vector<416x128xbf16>, vector<128x128xbf16>, vector<416x128xf32> -> vector<416x128xf32>
    %c0_3 = arith.constant 0 : index
    %c0_4 = arith.constant 0 : index
    %3 = vector.load %arg3[%c0_3, %c0_4] : memref<1x128xf32, #tpu.memory_space<vmem>>, vector<1x128xf32>
    %4 = vector.broadcast %3 : vector<1x128xf32> to vector<416x128xf32>
    %5 = arith.addf %2, %4 : vector<416x128xf32>
    %cst_5 = arith.constant 0.000000e+00 : f32
    %6 = vector.broadcast %cst_5 : f32 to vector<416x128xf32>
    %7 = arith.maximumf %5, %6 : vector<416x128xf32>
    %8 = arith.truncf %7 : vector<416x128xf32> to vector<416x128xbf16>
    %c0_6 = arith.constant 0 : index
    %c0_7 = arith.constant 0 : index
    %9 = vector.load %arg4[%c0_6, %c0_7] : memref<128x128xbf16, #tpu.memory_space<vmem>>, vector<128x128xbf16>
    %cst_8 = arith.constant dense<0.000000e+00> : vector<416x128xf32>
    %10 = tpu.matmul %8, %9, %cst_8 {dimension_numbers = #tpu.dot_dimension_numbers<[1], [0], [0], [1], [0, 0, 1, 1], [], []>} : vector<416x128xbf16>, vector<128x128xbf16>, vector<416x128xf32> -> vector<416x128xf32>
    %c0_9 = arith.constant 0 : index
    %c0_10 = arith.constant 0 : index
    %11 = vector.load %arg5[%c0_9, %c0_10] : memref<1x128xf32, #tpu.memory_space<vmem>>, vector<1x128xf32>
    %12 = vector.broadcast %11 : vector<1x128xf32> to vector<416x128xf32>
    %13 = arith.addf %10, %12 : vector<416x128xf32>
    %cst_11 = arith.constant 0.000000e+00 : f32
    %14 = vector.broadcast %cst_11 : f32 to vector<416x128xf32>
    %15 = arith.maximumf %13, %14 : vector<416x128xf32>
    %16 = arith.truncf %15 : vector<416x128xf32> to vector<416x128xbf16>
    %17 = vector.extract_strided_slice %16 {offsets = [0, 0], sizes = [208, 128], strides = [1, 1]} : vector<416x128xbf16> to vector<208x128xbf16>
    %18 = vector.extract_strided_slice %16 {offsets = [208, 0], sizes = [208, 128], strides = [1, 1]} : vector<416x128xbf16> to vector<208x128xbf16>
    %c0_12 = arith.constant 0 : index
    %c0_13 = arith.constant 0 : index
    %19 = vector.load %arg6[%c0_12, %c0_13] : memref<128x128xbf16, #tpu.memory_space<vmem>>, vector<128x128xbf16>
    %cst_14 = arith.constant dense<0.000000e+00> : vector<208x128xf32>
    %20 = tpu.matmul %17, %19, %cst_14 {dimension_numbers = #tpu.dot_dimension_numbers<[1], [0], [0], [1], [0, 0, 1, 1], [], []>} : vector<208x128xbf16>, vector<128x128xbf16>, vector<208x128xf32> -> vector<208x128xf32>
    %c0_15 = arith.constant 0 : index
    %c0_16 = arith.constant 0 : index
    %21 = vector.load %arg7[%c0_15, %c0_16] : memref<128x128xbf16, #tpu.memory_space<vmem>>, vector<128x128xbf16>
    %cst_17 = arith.constant dense<0.000000e+00> : vector<208x128xf32>
    %22 = tpu.matmul %18, %21, %cst_17 {dimension_numbers = #tpu.dot_dimension_numbers<[1], [0], [0], [1], [0, 0, 1, 1], [], []>} : vector<208x128xbf16>, vector<128x128xbf16>, vector<208x128xf32> -> vector<208x128xf32>
    %23 = arith.addf %20, %22 : vector<208x128xf32>
    %c0_18 = arith.constant 0 : index
    %c0_19 = arith.constant 0 : index
    %24 = vector.load %arg8[%c0_18, %c0_19] : memref<1x128xf32, #tpu.memory_space<vmem>>, vector<1x128xf32>
    %25 = vector.broadcast %24 : vector<1x128xf32> to vector<208x128xf32>
    %26 = arith.addf %23, %25 : vector<208x128xf32>
    %cst_20 = arith.constant 0.000000e+00 : f32
    %27 = vector.broadcast %cst_20 : f32 to vector<208x128xf32>
    %28 = arith.maximumf %26, %27 : vector<208x128xf32>
    %29 = arith.truncf %28 : vector<208x128xf32> to vector<208x128xbf16>
    %c0_21 = arith.constant 0 : index
    %c0_22 = arith.constant 0 : index
    %30 = vector.load %arg9[%c0_21, %c0_22] : memref<128x128xbf16, #tpu.memory_space<vmem>>, vector<128x128xbf16>
    %cst_23 = arith.constant dense<0.000000e+00> : vector<208x128xf32>
    %31 = tpu.matmul %29, %30, %cst_23 {dimension_numbers = #tpu.dot_dimension_numbers<[1], [0], [0], [1], [0, 0, 1, 1], [], []>} : vector<208x128xbf16>, vector<128x128xbf16>, vector<208x128xf32> -> vector<208x128xf32>
    %c0_24 = arith.constant 0 : index
    %c0_25 = arith.constant 0 : index
    %32 = vector.load %arg10[%c0_24, %c0_25] : memref<1x128xf32, #tpu.memory_space<vmem>>, vector<1x128xf32>
    %33 = vector.broadcast %32 : vector<1x128xf32> to vector<208x128xf32>
    %34 = arith.addf %31, %33 : vector<208x128xf32>
    %cst_26 = arith.constant 0.000000e+00 : f32
    %35 = vector.broadcast %cst_26 : f32 to vector<208x128xf32>
    %36 = arith.maximumf %34, %35 : vector<208x128xf32>
    %37 = arith.truncf %36 : vector<208x128xf32> to vector<208x128xbf16>
    %c0_27 = arith.constant 0 : index
    %c0_28 = arith.constant 0 : index
    %38 = vector.load %arg11[%c0_27, %c0_28] : memref<128x128xbf16, #tpu.memory_space<vmem>>, vector<128x128xbf16>
    %cst_29 = arith.constant dense<0.000000e+00> : vector<208x128xf32>
    %39 = tpu.matmul %37, %38, %cst_29 {dimension_numbers = #tpu.dot_dimension_numbers<[1], [0], [0], [1], [0, 0, 1, 1], [], []>} : vector<208x128xbf16>, vector<128x128xbf16>, vector<208x128xf32> -> vector<208x128xf32>
    %c0_30 = arith.constant 0 : index
    %c0_31 = arith.constant 0 : index
    %40 = vector.load %arg12[%c0_30, %c0_31] : memref<1x128xf32, #tpu.memory_space<vmem>>, vector<1x128xf32>
    %41 = vector.broadcast %40 : vector<1x128xf32> to vector<208x128xf32>
    %42 = arith.addf %39, %41 : vector<208x128xf32>
    %43 = arith.negf %42 : vector<208x128xf32>
    %44 = math.exp %43 : vector<208x128xf32>
    %cst_32 = arith.constant 1.000000e+00 : f32
    %45 = vector.broadcast %cst_32 : f32 to vector<208x128xf32>
    %46 = arith.addf %45, %44 : vector<208x128xf32>
    %47 = arith.divf %45, %46 : vector<208x128xf32>
    %c0_33 = arith.constant 0 : index
    %c0_34 = arith.constant 0 : index
    %48 = vector.load %arg13[%c0_33, %c0_34] : memref<208x128xf32, #tpu.memory_space<vmem>>, vector<208x128xf32>
    tpu.vector_store %arg13[%c0_33, %c0_34], %47 {strides = array<i32>} : memref<208x128xf32, #tpu.memory_space<vmem>>, vector<208x128xf32>,
    return
  }
  func.func @transform_0(%arg0: i32) -> (i32, i32) {
    %c0_i32 = arith.constant 0 : i32
    %c0_i32_0 = arith.constant 0 : i32
    return %arg0, %c0_i32 : i32, i32
  }
  func.func @transform_1(%arg0: i32) -> (i32, i32) {
    %c0_i32 = arith.constant 0 : i32
    %c0_i32_0 = arith.constant 0 : i32
    %c0_i32_1 = arith.constant 0 : i32
    return %c0_i32, %c0_i32_0 : i32, i32
  }
  func.func @transform_2(%arg0: i32) -> (i32, i32) {
    %c0_i32 = arith.constant 0 : i32
    %c0_i32_0 = arith.constant 0 : i32
    %c0_i32_1 = arith.constant 0 : i32
    return %c0_i32, %c0_i32_0 : i32, i32
  }
  func.func @transform_3(%arg0: i32) -> (i32, i32) {
    %c0_i32 = arith.constant 0 : i32
    %c0_i32_0 = arith.constant 0 : i32
    %c0_i32_1 = arith.constant 0 : i32
    return %c0_i32, %c0_i32_0 : i32, i32
  }
  func.func @transform_4(%arg0: i32) -> (i32, i32) {
    %c0_i32 = arith.constant 0 : i32
    %c0_i32_0 = arith.constant 0 : i32
    %c0_i32_1 = arith.constant 0 : i32
    return %c0_i32, %c0_i32_0 : i32, i32
  }
  func.func @transform_5(%arg0: i32) -> (i32, i32) {
    %c0_i32 = arith.constant 0 : i32
    %c0_i32_0 = arith.constant 0 : i32
    %c0_i32_1 = arith.constant 0 : i32
    return %c0_i32, %c0_i32_0 : i32, i32
  }
  func.func @transform_6(%arg0: i32) -> (i32, i32) {
    %c0_i32 = arith.constant 0 : i32
    %c0_i32_0 = arith.constant 0 : i32
    %c0_i32_1 = arith.constant 0 : i32
    return %c0_i32, %c0_i32_0 : i32, i32
  }
  func.func @transform_7(%arg0: i32) -> (i32, i32) {
    %c0_i32 = arith.constant 0 : i32
    %c0_i32_0 = arith.constant 0 : i32
    %c0_i32_1 = arith.constant 0 : i32
    return %c0_i32, %c0_i32_0 : i32, i32
  }
  func.func @transform_8(%arg0: i32) -> (i32, i32) {
    %c0_i32 = arith.constant 0 : i32
    %c0_i32_0 = arith.constant 0 : i32
    %c0_i32_1 = arith.constant 0 : i32
    return %c0_i32, %c0_i32_0 : i32, i32
  }
  func.func @transform_9(%arg0: i32) -> (i32, i32) {
    %c0_i32 = arith.constant 0 : i32
    %c0_i32_0 = arith.constant 0 : i32
    %c0_i32_1 = arith.constant 0 : i32
    return %c0_i32, %c0_i32_0 : i32, i32
  }
  func.func @transform_10(%arg0: i32) -> (i32, i32) {
    %c0_i32 = arith.constant 0 : i32
    %c0_i32_0 = arith.constant 0 : i32
    %c0_i32_1 = arith.constant 0 : i32
    return %c0_i32, %c0_i32_0 : i32, i32
  }
  func.func @transform_11(%arg0: i32) -> (i32, i32) {
    %c0_i32 = arith.constant 0 : i32
    %c0_i32_0 = arith.constant 0 : i32
    %c0_i32_1 = arith.constant 0 : i32
    return %c0_i32, %c0_i32_0 : i32, i32
  }
  func.func @transform_12(%arg0: i32) -> (i32, i32) {
    %c0_i32 = arith.constant 0 : i32
    %c0_i32_0 = arith.constant 0 : i32
    return %arg0, %c0_i32 : i32, i32
  }
}

</mosaic_0001>

<llo_original>
// kernel: _bmn_ddi_forward_impl.1
$region0: #{_bmn_ddi_forward_impl.1}
  #allocation0 [shape = 'u32[]', space=smem, size = 0x4, offset = 0x4, fixed_abs, tag = 'smem constant byte address 0x4 - core index']
  #allocation1 [shape = 'u32[144,128]{1,0:T(1,128)}', space=vmem, size = 0x12000, scoped, tag = 'internal scratch']
  %s0 = inlined_call_operand.vmem [shape: bf16[416,128], index: 0, kind: input, shape index: {}]
  %s1 = inlined_call_operand.vmem [shape: bf16[128,128], index: 1, kind: input, shape index: {}]
  %s2 = inlined_call_operand.vmem [shape: f32[1,128], index: 2, kind: input, shape index: {}]
  %s3 = inlined_call_operand.vmem [shape: bf16[128,128], index: 3, kind: input, shape index: {}]
  %s4 = inlined_call_operand.vmem [shape: f32[1,128], index: 4, kind: input, shape index: {}]
  %s5 = inlined_call_operand.vmem [shape: bf16[128,128], index: 5, kind: input, shape index: {}]
  %s6 = inlined_call_operand.vmem [shape: bf16[128,128], index: 6, kind: input, shape index: {}]
  %s7 = inlined_call_operand.vmem [shape: f32[1,128], index: 7, kind: input, shape index: {}]
  %s8 = inlined_call_operand.vmem [shape: bf16[128,128], index: 8, kind: input, shape index: {}]
  %s9 = inlined_call_operand.vmem [shape: f32[1,128], index: 9, kind: input, shape index: {}]
  %s10 = inlined_call_operand.vmem [shape: bf16[128,128], index: 10, kind: input, shape index: {}]
  %s11 = inlined_call_operand.vmem [shape: f32[1,128], index: 11, kind: input, shape index: {}]
  %s12 = inlined_call_operand.vmem [shape: f32[208,128], index: 12, kind: output, shape index: {}]
  %s13 = sld [smem:[#allocation0]]
  $region58: #{_bmn_ddi_forward_impl.1} parent=0
    _
  %s15 = ssub.s32 1, %s13
  %s16 = scalar_select 0, %s15, %s13
  // Predicated region
  $region2: #{_bmn_ddi_forward_impl.1} parent=0 // pred_check
    _
  $region3: #{_bmn_ddi_forward_impl.1} parent=0 // pred_check_branch
    %18 = sbr.rel (0) target = $region5
  $region4: #{_bmn_ddi_forward_impl.1} parent=0 // pred_region
    _
  $region5: #{_bmn_ddi_forward_impl.1} parent=0 // pred_fallthru
    _
  // Predicated region
  $region6: #{_bmn_ddi_forward_impl.1} parent=0 // pred_check
    _
  $region7: #{_bmn_ddi_forward_impl.1} parent=0 // pred_check_branch
    %20 = sbr.rel (0) target = $region9
  $region8: #{_bmn_ddi_forward_impl.1} parent=0 // pred_region
    _
  $region9: #{_bmn_ddi_forward_impl.1} parent=0 // pred_fallthru
    _
  // Predicated region
  $region10: #{_bmn_ddi_forward_impl.1} parent=0 // pred_check
    _
  $region11: #{_bmn_ddi_forward_impl.1} parent=0 // pred_check_branch
    %22 = sbr.rel (0) target = $region13
  $region12: #{_bmn_ddi_forward_impl.1} parent=0 // pred_region
    _
  $region13: #{_bmn_ddi_forward_impl.1} parent=0 // pred_fallthru
    _
  // Predicated region
  $region14: #{_bmn_ddi_forward_impl.1} parent=0 // pred_check
    _
  $region15: #{_bmn_ddi_forward_impl.1} parent=0 // pred_check_branch
    %24 = sbr.rel (0) target = $region17
  $region16: #{_bmn_ddi_forward_impl.1} parent=0 // pred_region
    _
  $region17: #{_bmn_ddi_forward_impl.1} parent=0 // pred_fallthru
    _
  // Predicated region
  $region18: #{_bmn_ddi_forward_impl.1} parent=0 // pred_check
    _
  $region19: #{_bmn_ddi_forward_impl.1} parent=0 // pred_check_branch
    %26 = sbr.rel (0) target = $region21
  $region20: #{_bmn_ddi_forward_impl.1} parent=0 // pred_region
    _
  $region21: #{_bmn_ddi_forward_impl.1} parent=0 // pred_fallthru
    _
  // Predicated region
  $region22: #{_bmn_ddi_forward_impl.1} parent=0 // pred_check
    _
  $region23: #{_bmn_ddi_forward_impl.1} parent=0 // pred_check_branch
    %28 = sbr.rel (0) target = $region25
  $region24: #{_bmn_ddi_forward_impl.1} parent=0 // pred_region
    _
  $region25: #{_bmn_ddi_forward_impl.1} parent=0 // pred_fallthru
    _
  // Predicated region
  $region26: #{_bmn_ddi_forward_impl.1} parent=0 // pred_check
    _
  $region27: #{_bmn_ddi_forward_impl.1} parent=0 // pred_check_branch
    %30 = sbr.rel (0) target = $region29
  $region28: #{_bmn_ddi_forward_impl.1} parent=0 // pred_region
    _
  $region29: #{_bmn_ddi_forward_impl.1} parent=0 // pred_fallthru
    _
  // Predicated region
  $region30: #{_bmn_ddi_forward_impl.1} parent=0 // pred_check
    _
  $region31: #{_bmn_ddi_forward_impl.1} parent=0 // pred_check_branch
    %32 = sbr.rel (0) target = $region33
  $region32: #{_bmn_ddi_forward_impl.1} parent=0 // pred_region
    _
  $region33: #{_bmn_ddi_forward_impl.1} parent=0 // pred_fallthru
    _
  // Predicated region
  $region34: #{_bmn_ddi_forward_impl.1} parent=0 // pred_check
    _
  $region35: #{_bmn_ddi_forward_impl.1} parent=0 // pred_check_branch
    %34 = sbr.rel (0) target = $region37
  $region36: #{_bmn_ddi_forward_impl.1} parent=0 // pred_region
    _
  $region37: #{_bmn_ddi_forward_impl.1} parent=0 // pred_fallthru
    _
  // Predicated region
  $region38: #{_bmn_ddi_forward_impl.1} parent=0 // pred_check
    _
  $region39: #{_bmn_ddi_forward_impl.1} parent=0 // pred_check_branch
    %36 = sbr.rel (0) target = $region41
  $region40: #{_bmn_ddi_forward_impl.1} parent=0 // pred_region
    _
  $region41: #{_bmn_ddi_forward_impl.1} parent=0 // pred_fallthru
    _
  // Predicated region
  $region42: #{_bmn_ddi_forward_impl.1} parent=0 // pred_check
    _
  $region43: #{_bmn_ddi_forward_impl.1} parent=0 // pred_check_branch
    %38 = sbr.rel (0) target = $region45
  $region44: #{_bmn_ddi_forward_impl.1} parent=0 // pred_region
    _
  $region45: #{_bmn_ddi_forward_impl.1} parent=0 // pred_fallthru
    _
  // Predicated region
  $region46: #{_bmn_ddi_forward_impl.1} parent=0 // pred_check
    _
  $region47: #{_bmn_ddi_forward_impl.1} parent=0 // pred_check_branch
    %40 = sbr.rel (0) target = $region49
  $region48: #{_bmn_ddi_forward_impl.1} parent=0 // pred_region
    _
  $region49: #{_bmn_ddi_forward_impl.1} parent=0 // pred_fallthru
    _
  %v42 = vld [vmem:[%s0] sm:$0xf]
  %v43 = vld [vmem:[%s0 + $0x4] sm:$0xf]
  %v44 = vld [vmem:[%s0 + $0x8] sm:$0xf]
  %v45 = vld [vmem:[%s0 + $0xc] sm:$0xf]
  %v46 = vld [vmem:[%s0 + $0x10] sm:$0xf]
  %v47 = vld [vmem:[%s0 + $0x14] sm:$0xf]
  %v48 = vld [vmem:[%s0 + $0x18] sm:$0xf]
  %v49 = vld [vmem:[%s0 + $0x1c] sm:$0xf]
  %v50 = vld [vmem:[%s0 + $0x20] sm:$0xf]
  %v51 = vld [vmem:[%s0 + $0x24] sm:$0xf]
  %v52 = vld [vmem:[%s0 + $0x28] sm:$0xf]
  %v53 = vld [vmem:[%s0 + $0x2c] sm:$0xf]
  %v54 = vld [vmem:[%s0 + $0x30] sm:$0xf]
  %v55 = vld [vmem:[%s0 + $0x34] sm:$0xf]
  %v56 = vld [vmem:[%s0 + $0x38] sm:$0xf]
  %v57 = vld [vmem:[%s0 + $0x3c] sm:$0xf]
  %v58 = vld [vmem:[%s0 + $0x40] sm:$0xf]
  %v59 = vld [vmem:[%s0 + $0x44] sm:$0xf]
  %v60 = vld [vmem:[%s0 + $0x48] sm:$0xf]
  %v61 = vld [vmem:[%s0 + $0x4c] sm:$0xf]
  %v62 = vld [vmem:[%s0 + $0x50] sm:$0xf]
  %v63 = vld [vmem:[%s0 + $0x54] sm:$0xf]
  %v64 = vld [vmem:[%s0 + $0x58] sm:$0xf]
  %v65 = vld [vmem:[%s0 + $0x5c] sm:$0xf]
  %v66 = vld [vmem:[%s0 + $0x60] sm:$0xf]
  %v67 = vld [vmem:[%s0 + $0x64] sm:$0xf]
  %v68 = vld [vmem:[%s0 + $0x68] sm:$0xf]
  %v69 = vld [vmem:[%s0 + $0x6c] sm:$0xf]
  %v70 = vld [vmem:[%s0 + $0x70] sm:$0xf]
  %v71 = vld [vmem:[%s0 + $0x74] sm:$0xf]
  %v72 = vld [vmem:[%s0 + $0x78] sm:$0xf]
  %v73 = vld [vmem:[%s0 + $0x7c] sm:$0xf]
  %v74 = vld [vmem:[%s0 + $0x80] sm:$0xf]
  %v75 = vld [vmem:[%s0 + $0x84] sm:$0xf]
  %v76 = vld [vmem:[%s0 + $0x88] sm:$0xf]
  %v77 = vld [vmem:[%s0 + $0x8c] sm:$0xf]
  %v78 = vld [vmem:[%s0 + $0x90] sm:$0xf]
  %v79 = vld [vmem:[%s0 + $0x94] sm:$0xf]
  %v80 = vld [vmem:[%s0 + $0x98] sm:$0xf]
  %v81 = vld [vmem:[%s0 + $0x9c] sm:$0xf]
  %v82 = vld [vmem:[%s0 + $0xa0] sm:$0xf]
  %v83 = vld [vmem:[%s0 + $0xa4] sm:$0xf]
  %v84 = vld [vmem:[%s0 + $0xa8] sm:$0xf]
  %v85 = vld [vmem:[%s0 + $0xac] sm:$0xf]
  %v86 = vld [vmem:[%s0 + $0xb0] sm:$0xf]
  %v87 = vld [vmem:[%s0 + $0xb4] sm:$0xf]
  %v88 = vld [vmem:[%s0 + $0xb8] sm:$0xf]
  %v89 = vld [vmem:[%s0 + $0xbc] sm:$0xf]
  %v90 = vld [vmem:[%s0 + $0xc0] sm:$0xf]
  %v91 = vld [vmem:[%s0 + $0xc4] sm:$0xf]
  %v92 = vld [vmem:[%s0 + $0xc8] sm:$0xf]
  %v93 = vld [vmem:[%s0 + $0xcc] sm:$0xf]
  %v94 = vld [vmem:[%s1] sm:$0xf]
  %v95 = vld [vmem:[%s1 + $0x4] sm:$0xf]
  %v96 = vld [vmem:[%s1 + $0x8] sm:$0xf]
  %v97 = vld [vmem:[%s1 + $0xc] sm:$0xf]
  %v98 = vld [vmem:[%s1 + $0x10] sm:$0xf]
  %v99 = vld [vmem:[%s1 + $0x14] sm:$0xf]
  %v100 = vld [vmem:[%s1 + $0x18] sm:$0xf]
  %v101 = vld [vmem:[%s1 + $0x1c] sm:$0xf]
  %v102 = vld [vmem:[%s1 + $0x20] sm:$0xf]
  %v103 = vld [vmem:[%s1 + $0x24] sm:$0xf]
  %v104 = vld [vmem:[%s1 + $0x28] sm:$0xf]
  %v105 = vld [vmem:[%s1 + $0x2c] sm:$0xf]
  %v106 = vld [vmem:[%s1 + $0x30] sm:$0xf]
  %v107 = vld [vmem:[%s1 + $0x34] sm:$0xf]
  %v108 = vld [vmem:[%s1 + $0x38] sm:$0xf]
  %v109 = vld [vmem:[%s1 + $0x3c] sm:$0xf]
  %v110 = vld [vmem:[%s2] sm:$0x1]
  %v112 = vlaneseq
  %v113 = vshrl.u32 %v112, 7
  %v114 = vsub.s32 0, %v113
  %v115 = vrot.slane %v110, %v114
  %v169 = vunpack.c.l.b16 %v42
  %v170 = vunpack.c.l.b16 %v43
  %v171 = vunpack.c.l.b16 %v44
  %v172 = vunpack.c.l.b16 %v45
  %v173 = vunpack.c.l.b16 %v46
  %v174 = vunpack.c.l.b16 %v47
  %v175 = vunpack.c.l.b16 %v48
  %v176 = vunpack.c.l.b16 %v49
  %v177 = vunpack.c.l.b16 %v50
  %v178 = vunpack.c.l.b16 %v51
  %v179 = vunpack.c.l.b16 %v52
  %v180 = vunpack.c.l.b16 %v53
  %v181 = vunpack.c.l.b16 %v54
  %v182 = vunpack.c.l.b16 %v55
  %v183 = vunpack.c.l.b16 %v56
  %v184 = vunpack.c.l.b16 %v57
  %v185 = vunpack.c.l.b16 %v58
  %v186 = vunpack.c.l.b16 %v59
  %v187 = vunpack.c.l.b16 %v60
  %v188 = vunpack.c.l.b16 %v61
  %v189 = vunpack.c.l.b16 %v62
  %v190 = vunpack.c.l.b16 %v63
  %v191 = vunpack.c.l.b16 %v64
  %v192 = vunpack.c.l.b16 %v65
  %v193 = vunpack.c.l.b16 %v66
  %v194 = vunpack.c.l.b16 %v67
  %v195 = vunpack.c.l.b16 %v68
  %v196 = vunpack.c.l.b16 %v69
  %v197 = vunpack.c.l.b16 %v70
  %v198 = vunpack.c.l.b16 %v71
  %v199 = vunpack.c.l.b16 %v72
  %v200 = vunpack.c.l.b16 %v73
  %v201 = vunpack.c.l.b16 %v74
  %v202 = vunpack.c.l.b16 %v75
  %v203 = vunpack.c.l.b16 %v76
  %v204 = vunpack.c.l.b16 %v77
  %v205 = vunpack.c.l.b16 %v78
  %v206 = vunpack.c.l.b16 %v79
  %v207 = vunpack.c.l.b16 %v80
  %v208 = vunpack.c.l.b16 %v81
  %v209 = vunpack.c.l.b16 %v82
  %v210 = vunpack.c.l.b16 %v83
  %v211 = vunpack.c.l.b16 %v84
  %v212 = vunpack.c.l.b16 %v85
  %v213 = vunpack.c.l.b16 %v86
  %v214 = vunpack.c.l.b16 %v87
  %v215 = vunpack.c.l.b16 %v88
  %v216 = vunpack.c.l.b16 %v89
  %v217 = vunpack.c.l.b16 %v90
  %v218 = vunpack.c.l.b16 %v91
  %v219 = vunpack.c.l.b16 %v92
  %v220 = vunpack.c.l.b16 %v93
  %v221 = vpack.c.b16 %v170, %v169
  %v222 = vpack.c.b16 %v172, %v171
  %v223 = vpack.c.b16 %v174, %v173
  %v224 = vpack.c.b16 %v176, %v175
  %v225 = vpack.c.b16 %v178, %v177
  %v226 = vpack.c.b16 %v180, %v179
  %v227 = vpack.c.b16 %v182, %v181
  %v228 = vpack.c.b16 %v184, %v183
  %v229 = vpack.c.b16 %v186, %v185
  %v230 = vpack.c.b16 %v188, %v187
  %v231 = vpack.c.b16 %v190, %v189
  %v232 = vpack.c.b16 %v192, %v191
  %v233 = vpack.c.b16 %v194, %v193
  %v234 = vpack.c.b16 %v196, %v195
  %v235 = vpack.c.b16 %v198, %v197
  %v236 = vpack.c.b16 %v200, %v199
  %v237 = vpack.c.b16 %v202, %v201
  %v238 = vpack.c.b16 %v204, %v203
  %v239 = vpack.c.b16 %v206, %v205
  %v240 = vpack.c.b16 %v208, %v207
  %v241 = vpack.c.b16 %v210, %v209
  %v242 = vpack.c.b16 %v212, %v211
  %v243 = vpack.c.b16 %v214, %v213
  %v244 = vpack.c.b16 %v216, %v215
  %v245 = vpack.c.b16 %v218, %v217
  %v246 = vpack.c.b16 %v220, %v219
  %v289 = vunpack.c.l.b16 %v94
  %v290 = vunpack.c.l.b16 %v95
  %v291 = vunpack.c.l.b16 %v96
  %v292 = vunpack.c.l.b16 %v97
  %v293 = vunpack.c.l.b16 %v98
  %v294 = vunpack.c.l.b16 %v99
  %v295 = vunpack.c.l.b16 %v100
  %v296 = vunpack.c.l.b16 %v101
  %v297 = vunpack.c.l.b16 %v102
  %v298 = vunpack.c.l.b16 %v103
  %v299 = vunpack.c.l.b16 %v104
  %v300 = vunpack.c.l.b16 %v105
  %v301 = vunpack.c.l.b16 %v106
  %v302 = vunpack.c.l.b16 %v107
  %v303 = vunpack.c.l.b16 %v108
  %v304 = vunpack.c.l.b16 %v109
  %v305 = vpack.c.b16 %v290, %v289
  %v306 = vpack.c.b16 %v292, %v291
  %v307 = vpack.c.b16 %v294, %v293
  %v308 = vpack.c.b16 %v296, %v295
  %v309 = vpack.c.b16 %v298, %v297
  %v310 = vpack.c.b16 %v300, %v299
  %v311 = vpack.c.b16 %v302, %v301
  %v312 = vpack.c.b16 %v304, %v303
  %321 = vmatprep.subr.bf16.mxu0 0
  %322 = vmatpush1.bf16.msra.mxu0 %v305
  %323 = vmatprep.subr.bf16.mxu0 0
  %324 = vmatpush1.bf16.msra.mxu0 %v306
  %325 = vmatprep.subr.bf16.mxu0 0
  %326 = vmatpush1.bf16.msra.mxu0 %v307
  %327 = vmatprep.subr.bf16.mxu0 0
  %328 = vmatpush1.bf16.msra.mxu0 %v308
  %329 = vmatprep.subr.bf16.mxu0 0
  %330 = vmatpush1.bf16.msra.mxu0 %v309
  %331 = vmatprep.subr.bf16.mxu0 0
  %332 = vmatpush1.bf16.msra.mxu0 %v310
  %333 = vmatprep.subr.bf16.mxu0 0
  %334 = vmatpush1.bf16.msra.mxu0 %v311
  %335 = vmatprep.subr.bf16.mxu0 0
  %336 = vmatpush1.bf16.msra.mxu0 %v312
  %337 = vmatprep.subr.bf16.mxu0 0
  %338 = vmatpush1.bf16.msra.mxu0 0
  %339 = vmatprep.subr.bf16.mxu0 0
  %340 = vmatpush1.bf16.msra.mxu0 0
  %341 = vmatprep.subr.bf16.mxu0 0
  %342 = vmatpush1.bf16.msra.mxu0 0
  %343 = vmatprep.subr.bf16.mxu0 0
  %344 = vmatpush1.bf16.msra.mxu0 0
  %345 = vmatprep.subr.bf16.mxu0 0
  %346 = vmatpush1.bf16.msra.mxu0 0
  %347 = vmatprep.subr.bf16.mxu0 0
  %348 = vmatpush1.bf16.msra.mxu0 0
  %349 = vmatprep.subr.bf16.mxu0 0
  %350 = vmatpush1.bf16.msra.mxu0 0
  %351 = vmatprep.subr.bf16.mxu0 0
  %352 = vmatpush1.bf16.msra.mxu0 0
  %353 = vmatprep.mubr.bf16.mxu0 0
  %354 = vmatmul.mubr.bf16.gmra.mrb[0].mxu0 %v221
  %v355 = vpop.f32.mrb[0].mxu0
  %v356 = vadd.f32 %v115, %v355
  %v357 = vpop.f32.mrb[0].mxu0
  %v358 = vpop.f32.mrb[0].mxu0
  %v359 = vadd.f32 %v115, %v358
  %v360 = vpop.f32.mrb[0].mxu0
  %361 = vmatprep.mubr.bf16.mxu0 0
  %362 = vmatmul.mubr.bf16.gmra.mrb[0].mxu0 %v222
  %v363 = vpop.f32.mrb[0].mxu0
  %v364 = vadd.f32 %v115, %v363
  %v365 = vpop.f32.mrb[0].mxu0
  %v366 = vpop.f32.mrb[0].mxu0
  %v367 = vadd.f32 %v115, %v366
  %v368 = vpop.f32.mrb[0].mxu0
  %369 = vmatprep.mubr.bf16.mxu0 0
  %370 = vmatmul.mubr.bf16.gmra.mrb[0].mxu0 %v223
  %v371 = vpop.f32.mrb[0].mxu0
  %v372 = vadd.f32 %v115, %v371
  %v373 = vpop.f32.mrb[0].mxu0
  %v374 = vpop.f32.mrb[0].mxu0
  %v375 = vadd.f32 %v115, %v374
  %v376 = vpop.f32.mrb[0].mxu0
  %377 = vmatprep.mubr.bf16.mxu0 0
  %378 = vmatmul.mubr.bf16.gmra.mrb[0].mxu0 %v224
  %v379 = vpop.f32.mrb[0].mxu0
  %v380 = vadd.f32 %v115, %v379
  %v381 = vpop.f32.mrb[0].mxu0
  %v382 = vpop.f32.mrb[0].mxu0
  %v383 = vadd.f32 %v115, %v382
  %v384 = vpop.f32.mrb[0].mxu0
  %385 = vmatprep.mubr.bf16.mxu0 0
  %386 = vmatmul.mubr.bf16.gmra.mrb[0].mxu0 %v225
  %v387 = vpop.f32.mrb[0].mxu0
  %v388 = vadd.f32 %v115, %v387
  %v389 = vpop.f32.mrb[0].mxu0
  %v390 = vpop.f32.mrb[0].mxu0
  %v391 = vadd.f32 %v115, %v390
  %v392 = vpop.f32.mrb[0].mxu0
  %393 = vmatprep.mubr.bf16.mxu0 0
  %394 = vmatmul.mubr.bf16.gmra.mrb[0].mxu0 %v226
  %v395 = vpop.f32.mrb[0].mxu0
  %v396 = vadd.f32 %v115, %v395
  %v397 = vpop.f32.mrb[0].mxu0
  %v398 = vpop.f32.mrb[0].mxu0
  %v399 = vadd.f32 %v115, %v398
  %v400 = vpop.f32.mrb[0].mxu0
  %401 = vmatprep.mubr.bf16.mxu0 0
  %402 = vmatmul.mubr.bf16.gmra.mrb[0].mxu0 %v227
  %v403 = vpop.f32.mrb[0].mxu0
  %v404 = vadd.f32 %v115, %v403
  %v405 = vpop.f32.mrb[0].mxu0
  %v406 = vpop.f32.mrb[0].mxu0
  %v407 = vadd.f32 %v115, %v406
  %v408 = vpop.f32.mrb[0].mxu0
  %409 = vmatprep.mubr.bf16.mxu0 0
  %410 = vmatmul.mubr.bf16.gmra.mrb[0].mxu0 %v228
  %v411 = vpop.f32.mrb[0].mxu0
  %v412 = vadd.f32 %v115, %v411
  %v413 = vpop.f32.mrb[0].mxu0
  %v414 = vpop.f32.mrb[0].mxu0
  %v415 = vadd.f32 %v115, %v414
  %v416 = vpop.f32.mrb[0].mxu0
  %417 = vmatprep.mubr.bf16.mxu0 0
  %418 = vmatmul.mubr.bf16.gmra.mrb[0].mxu0 %v229
  %v419 = vpop.f32.mrb[0].mxu0
  %v420 = vadd.f32 %v115, %v419
  %v421 = vpop.f32.mrb[0].mxu0
  %v422 = vpop.f32.mrb[0].mxu0
  %v423 = vadd.f32 %v115, %v422
  %v424 = vpop.f32.mrb[0].mxu0
  %425 = vmatprep.mubr.bf16.mxu0 0
  %426 = vmatmul.mubr.bf16.gmra.mrb[0].mxu0 %v230
  %v427 = vpop.f32.mrb[0].mxu0
  %v428 = vadd.f32 %v115, %v427
  %v429 = vpop.f32.mrb[0].mxu0
  %v430 = vpop.f32.mrb[0].mxu0
  %v431 = vadd.f32 %v115, %v430
  %v432 = vpop.f32.mrb[0].mxu0
  %433 = vmatprep.mubr.bf16.mxu0 0
  %434 = vmatmul.mubr.bf16.gmra.mrb[0].mxu0 %v231
  %v435 = vpop.f32.mrb[0].mxu0
  %v436 = vadd.f32 %v115, %v435
  %v437 = vpop.f32.mrb[0].mxu0
  %v438 = vpop.f32.mrb[0].mxu0
  %v439 = vadd.f32 %v115, %v438
  %v440 = vpop.f32.mrb[0].mxu0
  %441 = vmatprep.mubr.bf16.mxu0 0
  %442 = vmatmul.mubr.bf16.gmra.mrb[0].mxu0 %v232
  %v443 = vpop.f32.mrb[0].mxu0
  %v444 = vadd.f32 %v115, %v443
  %v445 = vpop.f32.mrb[0].mxu0
  %v446 = vpop.f32.mrb[0].mxu0
  %v447 = vadd.f32 %v115, %v446
  %v448 = vpop.f32.mrb[0].mxu0
  %449 = vmatprep.mubr.bf16.mxu0 0
  %450 = vmatmul.mubr.bf16.gmra.mrb[0].mxu0 %v233
  %v451 = vpop.f32.mrb[0].mxu0
  %v452 = vadd.f32 %v115, %v451
  %v453 = vpop.f32.mrb[0].mxu0
  %v454 = vpop.f32.mrb[0].mxu0
  %v455 = vadd.f32 %v115, %v454
  %v456 = vpop.f32.mrb[0].mxu0
  %457 = vmatprep.mubr.bf16.mxu0 0
  %458 = vmatmul.mubr.bf16.gmra.mrb[0].mxu0 %v234
  %v459 = vpop.f32.mrb[0].mxu0
  %v460 = vadd.f32 %v115, %v459
  %v461 = vpop.f32.mrb[0].mxu0
  %v462 = vpop.f32.mrb[0].mxu0
  %v463 = vadd.f32 %v115, %v462
  %v464 = vpop.f32.mrb[0].mxu0
  %465 = vmatprep.mubr.bf16.mxu0 0
  %466 = vmatmul.mubr.bf16.gmra.mrb[0].mxu0 %v235
  %v467 = vpop.f32.mrb[0].mxu0
  %v468 = vadd.f32 %v115, %v467
  %v469 = vpop.f32.mrb[0].mxu0
  %v470 = vpop.f32.mrb[0].mxu0
  %v471 = vadd.f32 %v115, %v470
  %v472 = vpop.f32.mrb[0].mxu0
  %473 = vmatprep.mubr.bf16.mxu0 0
  %474 = vmatmul.mubr.bf16.gmra.mrb[0].mxu0 %v236
  %v475 = vpop.f32.mrb[0].mxu0
  %v476 = vadd.f32 %v115, %v475
  %v477 = vpop.f32.mrb[0].mxu0
  %v478 = vpop.f32.mrb[0].mxu0
  %v479 = vadd.f32 %v115, %v478
  %v480 = vpop.f32.mrb[0].mxu0
  %481 = vmatprep.mubr.bf16.mxu0 0
  %482 = vmatmul.mubr.bf16.gmra.mrb[0].mxu0 %v237
  %v483 = vpop.f32.mrb[0].mxu0
  %v484 = vadd.f32 %v115, %v483
  %v485 = vpop.f32.mrb[0].mxu0
  %v486 = vpop.f32.mrb[0].mxu0
  %v487 = vadd.f32 %v115, %v486
  %v488 = vpop.f32.mrb[0].mxu0
  %489 = vmatprep.mubr.bf16.mxu0 0
  %490 = vmatmul.mubr.bf16.gmra.mrb[0].mxu0 %v238
  %v491 = vpop.f32.mrb[0].mxu0
  %v492 = vadd.f32 %v115, %v491
  %v493 = vpop.f32.mrb[0].mxu0
  %v494 = vpop.f32.mrb[0].mxu0
  %v495 = vadd.f32 %v115, %v494
  %v496 = vpop.f32.mrb[0].mxu0
  %497 = vmatprep.mubr.bf16.mxu0 0
  %498 = vmatmul.mubr.bf16.gmra.mrb[0].mxu0 %v239
  %v499 = vpop.f32.mrb[0].mxu0
  %v500 = vadd.f32 %v115, %v499
  %v501 = vpop.f32.mrb[0].mxu0
  %v502 = vpop.f32.mrb[0].mxu0
  %v503 = vadd.f32 %v115, %v502
  %v504 = vpop.f32.mrb[0].mxu0
  %505 = vmatprep.mubr.bf16.mxu0 0
  %506 = vmatmul.mubr.bf16.gmra.mrb[0].mxu0 %v240
  %v507 = vpop.f32.mrb[0].mxu0
  %v508 = vadd.f32 %v115, %v507
  %v509 = vpop.f32.mrb[0].mxu0
  %v510 = vpop.f32.mrb[0].mxu0
  %v511 = vadd.f32 %v115, %v510
  %v512 = vpop.f32.mrb[0].mxu0
  %513 = vmatprep.mubr.bf16.mxu0 0
  %514 = vmatmul.mubr.bf16.gmra.mrb[0].mxu0 %v241
  %v515 = vpop.f32.mrb[0].mxu0
  %v516 = vadd.f32 %v115, %v515
  %v517 = vpop.f32.mrb[0].mxu0
  %v518 = vpop.f32.mrb[0].mxu0
  %v519 = vadd.f32 %v115, %v518
  %v520 = vpop.f32.mrb[0].mxu0
  %521 = vmatprep.mubr.bf16.mxu0 0
  %522 = vmatmul.mubr.bf16.gmra.mrb[0].mxu0 %v242
  %v523 = vpop.f32.mrb[0].mxu0
  %v524 = vadd.f32 %v115, %v523
  %v525 = vpop.f32.mrb[0].mxu0
  %v526 = vpop.f32.mrb[0].mxu0
  %v527 = vadd.f32 %v115, %v526
  %v528 = vpop.f32.mrb[0].mxu0
  %529 = vmatprep.mubr.bf16.mxu0 0
  %530 = vmatmul.mubr.bf16.gmra.mrb[0].mxu0 %v243
  %v531 = vpop.f32.mrb[0].mxu0
  %v532 = vadd.f32 %v115, %v531
  %v533 = vpop.f32.mrb[0].mxu0
  %v534 = vpop.f32.mrb[0].mxu0
  %v535 = vadd.f32 %v115, %v534
  %v536 = vpop.f32.mrb[0].mxu0
  %537 = vmatprep.mubr.bf16.mxu0 0
  %538 = vmatmul.mubr.bf16.gmra.mrb[0].mxu0 %v244
  %v539 = vpop.f32.mrb[0].mxu0
  %v540 = vadd.f32 %v115, %v539
  %v541 = vpop.f32.mrb[0].mxu0
  %v542 = vpop.f32.mrb[0].mxu0
  %v543 = vadd.f32 %v115, %v542
  %v544 = vpop.f32.mrb[0].mxu0
  %545 = vmatprep.mubr.bf16.mxu0 0
  %546 = vmatmul.mubr.bf16.gmra.mrb[0].mxu0 %v245
  %v547 = vpop.f32.mrb[0].mxu0
  %v548 = vadd.f32 %v115, %v547
  %v549 = vpop.f32.mrb[0].mxu0
  %v550 = vpop.f32.mrb[0].mxu0
  %v551 = vadd.f32 %v115, %v550
  %v552 = vpop.f32.mrb[0].mxu0
  %553 = vmatprep.mubr.bf16.mxu0 0
  %554 = vmatmul.mubr.bf16.gmra.mrb[0].mxu0 %v246
  %v555 = vpop.f32.mrb[0].mxu0
  %v556 = vadd.f32 %v115, %v555
  %v557 = vpop.f32.mrb[0].mxu0
  %v558 = vpop.f32.mrb[0].mxu0
  %v559 = vadd.f32 %v115, %v558
  %v560 = vpop.f32.mrb[0].mxu0
  %561 = vdwg.mxu0
  %v562 = vmax.f32 %v356, 0.0
  %v563 = vmax.f32 %v359, 0.0
  %v564 = vmax.f32 %v364, 0.0
  %v565 = vmax.f32 %v367, 0.0
  %v566 = vmax.f32 %v372, 0.0
  %v567 = vmax.f32 %v375, 0.0
  %v568 = vmax.f32 %v380, 0.0
  %v569 = vmax.f32 %v383, 0.0
  %v570 = vmax.f32 %v388, 0.0
  %v571 = vmax.f32 %v391, 0.0
  %v572 = vmax.f32 %v396, 0.0
  %v573 = vmax.f32 %v399, 0.0
  %v574 = vmax.f32 %v404, 0.0
  %v575 = vmax.f32 %v407, 0.0
  %v576 = vmax.f32 %v412, 0.0
  %v577 = vmax.f32 %v415, 0.0
  %v578 = vmax.f32 %v420, 0.0
  %v579 = vmax.f32 %v423, 0.0
  %v580 = vmax.f32 %v428, 0.0
  %v581 = vmax.f32 %v431, 0.0
  %v582 = vmax.f32 %v436, 0.0
  %v583 = vmax.f32 %v439, 0.0
  %v584 = vmax.f32 %v444, 0.0
  %v585 = vmax.f32 %v447, 0.0
  %v586 = vmax.f32 %v452, 0.0
  %v587 = vmax.f32 %v455, 0.0
  %v588 = vmax.f32 %v460, 0.0
  %v589 = vmax.f32 %v463, 0.0
  %v590 = vmax.f32 %v468, 0.0
  %v591 = vmax.f32 %v471, 0.0
  %v592 = vmax.f32 %v476, 0.0
  %v593 = vmax.f32 %v479, 0.0
  %v594 = vmax.f32 %v484, 0.0
  %v595 = vmax.f32 %v487, 0.0
  %v596 = vmax.f32 %v492, 0.0
  %v597 = vmax.f32 %v495, 0.0
  %v598 = vmax.f32 %v500, 0.0
  %v599 = vmax.f32 %v503, 0.0
  %v600 = vmax.f32 %v508, 0.0
  %v601 = vmax.f32 %v511, 0.0
  %v602 = vmax.f32 %v516, 0.0
  %v603 = vmax.f32 %v519, 0.0
  %v604 = vmax.f32 %v524, 0.0
  %v605 = vmax.f32 %v527, 0.0
  %v606 = vmax.f32 %v532, 0.0
  %v607 = vmax.f32 %v535, 0.0
  %v608 = vmax.f32 %v540, 0.0
  %v609 = vmax.f32 %v543, 0.0
  %v610 = vmax.f32 %v548, 0.0
  %v611 = vmax.f32 %v551, 0.0
  %v612 = vmax.f32 %v556, 0.0
  %v613 = vmax.f32 %v559, 0.0
  %v614 = vpack.c.bf16 %v563, %v562
  %v615 = vpack.c.bf16 %v565, %v564
  %v616 = vpack.c.bf16 %v567, %v566
  %v617 = vpack.c.bf16 %v569, %v568
  %v618 = vpack.c.bf16 %v571, %v570
  %v619 = vpack.c.bf16 %v573, %v572
  %v620 = vpack.c.bf16 %v575, %v574
  %v621 = vpack.c.bf16 %v577, %v576
  %v622 = vpack.c.bf16 %v579, %v578
  %v623 = vpack.c.bf16 %v581, %v580
  %v624 = vpack.c.bf16 %v583, %v582
  %v625 = vpack.c.bf16 %v585, %v584
  %v626 = vpack.c.bf16 %v587, %v586
  %v627 = vpack.c.bf16 %v589, %v588
  %v628 = vpack.c.bf16 %v591, %v590
  %v629 = vpack.c.bf16 %v593, %v592
  %v630 = vpack.c.bf16 %v595, %v594
  %v631 = vpack.c.bf16 %v597, %v596
  %v632 = vpack.c.bf16 %v599, %v598
  %v633 = vpack.c.bf16 %v601, %v600
  %v634 = vpack.c.bf16 %v603, %v602
  %v635 = vpack.c.bf16 %v605, %v604
  %v636 = vpack.c.bf16 %v607, %v606
  %v637 = vpack.c.bf16 %v609, %v608
  %v638 = vpack.c.bf16 %v611, %v610
  %v639 = vpack.c.bf16 %v613, %v612
  %v640 = vld [vmem:[%s3] sm:$0xf]
  %v641 = vld [vmem:[%s3 + $0x4] sm:$0xf]
  %v642 = vld [vmem:[%s3 + $0x8] sm:$0xf]
  %v643 = vld [vmem:[%s3 + $0xc] sm:$0xf]
  %v644 = vld [vmem:[%s3 + $0x10] sm:$0xf]
  %v645 = vld [vmem:[%s3 + $0x14] sm:$0xf]
  %v646 = vld [vmem:[%s3 + $0x18] sm:$0xf]
  %v647 = vld [vmem:[%s3 + $0x1c] sm:$0xf]
  %v648 = vld [vmem:[%s3 + $0x20] sm:$0xf]
  %v649 = vld [vmem:[%s3 + $0x24] sm:$0xf]
  %v650 = vld [vmem:[%s3 + $0x28] sm:$0xf]
  %v651 = vld [vmem:[%s3 + $0x2c] sm:$0xf]
  %v652 = vld [vmem:[%s3 + $0x30] sm:$0xf]
  %v653 = vld [vmem:[%s3 + $0x34] sm:$0xf]
  %v654 = vld [vmem:[%s3 + $0x38] sm:$0xf]
  %v655 = vld [vmem:[%s3 + $0x3c] sm:$0xf]
  %v656 = vld [vmem:[%s4] sm:$0x1]
  %v658 = vlaneseq
  %v659 = vshrl.u32 %v658, 7
  %v660 = vsub.s32 0, %v659
  %v661 = vrot.slane %v656, %v660
  %v679 = vunpack.c.l.b16 %v640
  %v680 = vunpack.c.l.b16 %v641
  %v681 = vunpack.c.l.b16 %v642
  %v682 = vunpack.c.l.b16 %v643
  %v683 = vunpack.c.l.b16 %v644
  %v684 = vunpack.c.l.b16 %v645
  %v685 = vunpack.c.l.b16 %v646
  %v686 = vunpack.c.l.b16 %v647
  %v687 = vunpack.c.l.b16 %v648
  %v688 = vunpack.c.l.b16 %v649
  %v689 = vunpack.c.l.b16 %v650
  %v690 = vunpack.c.l.b16 %v651
  %v691 = vunpack.c.l.b16 %v652
  %v692 = vunpack.c.l.b16 %v653
  %v693 = vunpack.c.l.b16 %v654
  %v694 = vunpack.c.l.b16 %v655
  %v695 = vpack.c.b16 %v680, %v679
  %v696 = vpack.c.b16 %v682, %v681
  %v697 = vpack.c.b16 %v684, %v683
  %v698 = vpack.c.b16 %v686, %v685
  %v699 = vpack.c.b16 %v688, %v687
  %v700 = vpack.c.b16 %v690, %v689
  %v701 = vpack.c.b16 %v692, %v691
  %v702 = vpack.c.b16 %v694, %v693
  %711 = vmatprep.subr.bf16.mxu0 0
  %712 = vmatpush1.bf16.msra.mxu0 %v695
  %713 = vmatprep.subr.bf16.mxu0 0
  %714 = vmatpush1.bf16.msra.mxu0 %v696
  %715 = vmatprep.subr.bf16.mxu0 0
  %716 = vmatpush1.bf16.msra.mxu0 %v697
  %717 = vmatprep.subr.bf16.mxu0 0
  %718 = vmatpush1.bf16.msra.mxu0 %v698
  %719 = vmatprep.subr.bf16.mxu0 0
  %720 = vmatpush1.bf16.msra.mxu0 %v699
  %721 = vmatprep.subr.bf16.mxu0 0
  %722 = vmatpush1.bf16.msra.mxu0 %v700
  %723 = vmatprep.subr.bf16.mxu0 0
  %724 = vmatpush1.bf16.msra.mxu0 %v701
  %725 = vmatprep.subr.bf16.mxu0 0
  %726 = vmatpush1.bf16.msra.mxu0 %v702
  %727 = vmatprep.subr.bf16.mxu0 0
  %728 = vmatpush1.bf16.msra.mxu0 0
  %729 = vmatprep.subr.bf16.mxu0 0
  %730 = vmatpush1.bf16.msra.mxu0 0
  %731 = vmatprep.subr.bf16.mxu0 0
  %732 = vmatpush1.bf16.msra.mxu0 0
  %733 = vmatprep.subr.bf16.mxu0 0
  %734 = vmatpush1.bf16.msra.mxu0 0
  %735 = vmatprep.subr.bf16.mxu0 0
  %736 = vmatpush1.bf16.msra.mxu0 0
  %737 = vmatprep.subr.bf16.mxu0 0
  %738 = vmatpush1.bf16.msra.mxu0 0
  %739 = vmatprep.subr.bf16.mxu0 0
  %740 = vmatpush1.bf16.msra.mxu0 0
  %741 = vmatprep.subr.bf16.mxu0 0
  %742 = vmatpush1.bf16.msra.mxu0 0
  %743 = vmatprep.mubr.bf16.mxu0 0
  %744 = vmatmul.mubr.bf16.gmra.mrb[0].mxu0 %v614
  %v745 = vpop.f32.mrb[0].mxu0
  %v746 = vadd.f32 %v661, %v745
  %v747 = vpop.f32.mrb[0].mxu0
  %v748 = vpop.f32.mrb[0].mxu0
  %v749 = vadd.f32 %v661, %v748
  %v750 = vpop.f32.mrb[0].mxu0
  %751 = vmatprep.mubr.bf16.mxu0 0
  %752 = vmatmul.mubr.bf16.gmra.mrb[0].mxu0 %v615
  %v753 = vpop.f32.mrb[0].mxu0
  %v754 = vadd.f32 %v661, %v753
  %v755 = vpop.f32.mrb[0].mxu0
  %v756 = vpop.f32.mrb[0].mxu0
  %v757 = vadd.f32 %v661, %v756
  %v758 = vpop.f32.mrb[0].mxu0
  %759 = vmatprep.mubr.bf16.mxu0 0
  %760 = vmatmul.mubr.bf16.gmra.mrb[0].mxu0 %v616
  %v761 = vpop.f32.mrb[0].mxu0
  %v762 = vadd.f32 %v661, %v761
  %v763 = vpop.f32.mrb[0].mxu0
  %v764 = vpop.f32.mrb[0].mxu0
  %v765 = vadd.f32 %v661, %v764
  %v766 = vpop.f32.mrb[0].mxu0
  %767 = vmatprep.mubr.bf16.mxu0 0
  %768 = vmatmul.mubr.bf16.gmra.mrb[0].mxu0 %v617
  %v769 = vpop.f32.mrb[0].mxu0
  %v770 = vadd.f32 %v661, %v769
  %v771 = vpop.f32.mrb[0].mxu0
  %v772 = vpop.f32.mrb[0].mxu0
  %v773 = vadd.f32 %v661, %v772
  %v774 = vpop.f32.mrb[0].mxu0
  %775 = vmatprep.mubr.bf16.mxu0 0
  %776 = vmatmul.mubr.bf16.gmra.mrb[0].mxu0 %v618
  %v777 = vpop.f32.mrb[0].mxu0
  %v778 = vadd.f32 %v661, %v777
  %v779 = vpop.f32.mrb[0].mxu0
  %v780 = vpop.f32.mrb[0].mxu0
  %v781 = vadd.f32 %v661, %v780
  %v782 = vpop.f32.mrb[0].mxu0
  %783 = vmatprep.mubr.bf16.mxu0 0
  %784 = vmatmul.mubr.bf16.gmra.mrb[0].mxu0 %v619
  %v785 = vpop.f32.mrb[0].mxu0
  %v786 = vadd.f32 %v661, %v785
  %v787 = vpop.f32.mrb[0].mxu0
  %v788 = vpop.f32.mrb[0].mxu0
  %v789 = vadd.f32 %v661, %v788
  %v790 = vpop.f32.mrb[0].mxu0
  %791 = vmatprep.mubr.bf16.mxu0 0
  %792 = vmatmul.mubr.bf16.gmra.mrb[0].mxu0 %v620
  %v793 = vpop.f32.mrb[0].mxu0
  %v794 = vadd.f32 %v661, %v793
  %v795 = vpop.f32.mrb[0].mxu0
  %v796 = vpop.f32.mrb[0].mxu0
  %v797 = vadd.f32 %v661, %v796
  %v798 = vpop.f32.mrb[0].mxu0
  %799 = vmatprep.mubr.bf16.mxu0 0
  %800 = vmatmul.mubr.bf16.gmra.mrb[0].mxu0 %v621
  %v801 = vpop.f32.mrb[0].mxu0
  %v802 = vadd.f32 %v661, %v801
  %v803 = vpop.f32.mrb[0].mxu0
  %v804 = vpop.f32.mrb[0].mxu0
  %v805 = vadd.f32 %v661, %v804
  %v806 = vpop.f32.mrb[0].mxu0
  %807 = vmatprep.mubr.bf16.mxu0 0
  %808 = vmatmul.mubr.bf16.gmra.mrb[0].mxu0 %v622
  %v809 = vpop.f32.mrb[0].mxu0
  %v810 = vadd.f32 %v661, %v809
  %v811 = vpop.f32.mrb[0].mxu0
  %v812 = vpop.f32.mrb[0].mxu0
  %v813 = vadd.f32 %v661, %v812
  %v814 = vpop.f32.mrb[0].mxu0
  %815 = vmatprep.mubr.bf16.mxu0 0
  %816 = vmatmul.mubr.bf16.gmra.mrb[0].mxu0 %v623
  %v817 = vpop.f32.mrb[0].mxu0
  %v818 = vadd.f32 %v661, %v817
  %v819 = vpop.f32.mrb[0].mxu0
  %v820 = vpop.f32.mrb[0].mxu0
  %v821 = vadd.f32 %v661, %v820
  %v822 = vpop.f32.mrb[0].mxu0
  %823 = vmatprep.mubr.bf16.mxu0 0
  %824 = vmatmul.mubr.bf16.gmra.mrb[0].mxu0 %v624
  %v825 = vpop.f32.mrb[0].mxu0
  %v826 = vadd.f32 %v661, %v825
  %v827 = vpop.f32.mrb[0].mxu0
  %v828 = vpop.f32.mrb[0].mxu0
  %v829 = vadd.f32 %v661, %v828
  %v830 = vpop.f32.mrb[0].mxu0
  %831 = vmatprep.mubr.bf16.mxu0 0
  %832 = vmatmul.mubr.bf16.gmra.mrb[0].mxu0 %v625
  %v833 = vpop.f32.mrb[0].mxu0
  %v834 = vadd.f32 %v661, %v833
  %v835 = vpop.f32.mrb[0].mxu0
  %v836 = vpop.f32.mrb[0].mxu0
  %v837 = vadd.f32 %v661, %v836
  %v838 = vpop.f32.mrb[0].mxu0
  %839 = vmatprep.mubr.bf16.mxu0 0
  %840 = vmatmul.mubr.bf16.gmra.mrb[0].mxu0 %v626
  %v841 = vpop.f32.mrb[0].mxu0
  %v842 = vadd.f32 %v661, %v841
  %v843 = vpop.f32.mrb[0].mxu0
  %v844 = vpop.f32.mrb[0].mxu0
  %v845 = vadd.f32 %v661, %v844
  %v846 = vpop.f32.mrb[0].mxu0
  %847 = vmatprep.mubr.bf16.mxu0 0
  %848 = vmatmul.mubr.bf16.gmra.mrb[0].mxu0 %v627
  %v849 = vpop.f32.mrb[0].mxu0
  %v850 = vadd.f32 %v661, %v849
  %v851 = vpop.f32.mrb[0].mxu0
  %v852 = vpop.f32.mrb[0].mxu0
  %v853 = vadd.f32 %v661, %v852
  %v854 = vpop.f32.mrb[0].mxu0
  %855 = vmatprep.mubr.bf16.mxu0 0
  %856 = vmatmul.mubr.bf16.gmra.mrb[0].mxu0 %v628
  %v857 = vpop.f32.mrb[0].mxu0
  %v858 = vadd.f32 %v661, %v857
  %v859 = vpop.f32.mrb[0].mxu0
  %v860 = vpop.f32.mrb[0].mxu0
  %v861 = vadd.f32 %v661, %v860
  %v862 = vpop.f32.mrb[0].mxu0
  %863 = vmatprep.mubr.bf16.mxu0 0
  %864 = vmatmul.mubr.bf16.gmra.mrb[0].mxu0 %v629
  %v865 = vpop.f32.mrb[0].mxu0
  %v866 = vadd.f32 %v661, %v865
  %v867 = vpop.f32.mrb[0].mxu0
  %v868 = vpop.f32.mrb[0].mxu0
  %v869 = vadd.f32 %v661, %v868
  %v870 = vpop.f32.mrb[0].mxu0
  %871 = vmatprep.mubr.bf16.mxu0 0
  %872 = vmatmul.mubr.bf16.gmra.mrb[0].mxu0 %v630
  %v873 = vpop.f32.mrb[0].mxu0
  %v874 = vadd.f32 %v661, %v873
  %v875 = vpop.f32.mrb[0].mxu0
  %v876 = vpop.f32.mrb[0].mxu0
  %v877 = vadd.f32 %v661, %v876
  %v878 = vpop.f32.mrb[0].mxu0
  %879 = vmatprep.mubr.bf16.mxu0 0
  %880 = vmatmul.mubr.bf16.gmra.mrb[0].mxu0 %v631
  %v881 = vpop.f32.mrb[0].mxu0
  %v882 = vadd.f32 %v661, %v881
  %v883 = vpop.f32.mrb[0].mxu0
  %v884 = vpop.f32.mrb[0].mxu0
  %v885 = vadd.f32 %v661, %v884
  %v886 = vpop.f32.mrb[0].mxu0
  %887 = vmatprep.mubr.bf16.mxu0 0
  %888 = vmatmul.mubr.bf16.gmra.mrb[0].mxu0 %v632
  %v889 = vpop.f32.mrb[0].mxu0
  %v890 = vadd.f32 %v661, %v889
  %v891 = vpop.f32.mrb[0].mxu0
  %v892 = vpop.f32.mrb[0].mxu0
  %v893 = vadd.f32 %v661, %v892
  %v894 = vpop.f32.mrb[0].mxu0
  %895 = vmatprep.mubr.bf16.mxu0 0
  %896 = vmatmul.mubr.bf16.gmra.mrb[0].mxu0 %v633
  %v897 = vpop.f32.mrb[0].mxu0
  %v898 = vadd.f32 %v661, %v897
  %v899 = vpop.f32.mrb[0].mxu0
  %v900 = vpop.f32.mrb[0].mxu0
  %v901 = vadd.f32 %v661, %v900
  %v902 = vpop.f32.mrb[0].mxu0
  %903 = vmatprep.mubr.bf16.mxu0 0
  %904 = vmatmul.mubr.bf16.gmra.mrb[0].mxu0 %v634
  %v905 = vpop.f32.mrb[0].mxu0
  %v906 = vadd.f32 %v661, %v905
  %v907 = vpop.f32.mrb[0].mxu0
  %v908 = vpop.f32.mrb[0].mxu0
  %v909 = vadd.f32 %v661, %v908
  %v910 = vpop.f32.mrb[0].mxu0
  %911 = vmatprep.mubr.bf16.mxu0 0
  %912 = vmatmul.mubr.bf16.gmra.mrb[0].mxu0 %v635
  %v913 = vpop.f32.mrb[0].mxu0
  %v914 = vadd.f32 %v661, %v913
  %v915 = vpop.f32.mrb[0].mxu0
  %v916 = vpop.f32.mrb[0].mxu0
  %v917 = vadd.f32 %v661, %v916
  %v918 = vpop.f32.mrb[0].mxu0
  %919 = vmatprep.mubr.bf16.mxu0 0
  %920 = vmatmul.mubr.bf16.gmra.mrb[0].mxu0 %v636
  %v921 = vpop.f32.mrb[0].mxu0
  %v922 = vadd.f32 %v661, %v921
  %v923 = vpop.f32.mrb[0].mxu0
  %v924 = vpop.f32.mrb[0].mxu0
  %v925 = vadd.f32 %v661, %v924
  %v926 = vpop.f32.mrb[0].mxu0
  %927 = vmatprep.mubr.bf16.mxu0 0
  %928 = vmatmul.mubr.bf16.gmra.mrb[0].mxu0 %v637
  %v929 = vpop.f32.mrb[0].mxu0
  %v930 = vadd.f32 %v661, %v929
  %v931 = vpop.f32.mrb[0].mxu0
  %v932 = vpop.f32.mrb[0].mxu0
  %v933 = vadd.f32 %v661, %v932
  %v934 = vpop.f32.mrb[0].mxu0
  %935 = vmatprep.mubr.bf16.mxu0 0
  %936 = vmatmul.mubr.bf16.gmra.mrb[0].mxu0 %v638
  %v937 = vpop.f32.mrb[0].mxu0
  %v938 = vadd.f32 %v661, %v937
  %v939 = vpop.f32.mrb[0].mxu0
  %v940 = vpop.f32.mrb[0].mxu0
  %v941 = vadd.f32 %v661, %v940
  %v942 = vpop.f32.mrb[0].mxu0
  %943 = vmatprep.mubr.bf16.mxu0 0
  %944 = vmatmul.mubr.bf16.gmra.mrb[0].mxu0 %v639
  %v945 = vpop.f32.mrb[0].mxu0
  %v946 = vadd.f32 %v661, %v945
  %v947 = vpop.f32.mrb[0].mxu0
  %v948 = vpop.f32.mrb[0].mxu0
  %v949 = vadd.f32 %v661, %v948
  %v950 = vpop.f32.mrb[0].mxu0
  %951 = vdwg.mxu0
  %v952 = vmax.f32 %v746, 0.0
  %v953 = vmax.f32 %v749, 0.0
  %v954 = vmax.f32 %v754, 0.0
  %v955 = vmax.f32 %v757, 0.0
  %v956 = vmax.f32 %v762, 0.0
  %v957 = vmax.f32 %v765, 0.0
  %v958 = vmax.f32 %v770, 0.0
  %v959 = vmax.f32 %v773, 0.0
  %v960 = vmax.f32 %v778, 0.0
  %v961 = vmax.f32 %v781, 0.0
  %v962 = vmax.f32 %v786, 0.0
  %v963 = vmax.f32 %v789, 0.0
  %v964 = vmax.f32 %v794, 0.0
  %v965 = vmax.f32 %v797, 0.0
  %v966 = vmax.f32 %v802, 0.0
  %v967 = vmax.f32 %v805, 0.0
  %v968 = vmax.f32 %v810, 0.0
  %v969 = vmax.f32 %v813, 0.0
  %v970 = vmax.f32 %v818, 0.0
  %v971 = vmax.f32 %v821, 0.0
  %v972 = vmax.f32 %v826, 0.0
  %v973 = vmax.f32 %v829, 0.0
  %v974 = vmax.f32 %v834, 0.0
  %v975 = vmax.f32 %v837, 0.0
  %v976 = vmax.f32 %v842, 0.0
  %v977 = vmax.f32 %v845, 0.0
  %v978 = vmax.f32 %v850, 0.0
  %v979 = vmax.f32 %v853, 0.0
  %v980 = vmax.f32 %v858, 0.0
  %v981 = vmax.f32 %v861, 0.0
  %v982 = vmax.f32 %v866, 0.0
  %v983 = vmax.f32 %v869, 0.0
  %v984 = vmax.f32 %v874, 0.0
  %v985 = vmax.f32 %v877, 0.0
  %v986 = vmax.f32 %v882, 0.0
  %v987 = vmax.f32 %v885, 0.0
  %v988 = vmax.f32 %v890, 0.0
  %v989 = vmax.f32 %v893, 0.0
  %v990 = vmax.f32 %v898, 0.0
  %v991 = vmax.f32 %v901, 0.0
  %v992 = vmax.f32 %v906, 0.0
  %v993 = vmax.f32 %v909, 0.0
  %v994 = vmax.f32 %v914, 0.0
  %v995 = vmax.f32 %v917, 0.0
  %v996 = vmax.f32 %v922, 0.0
  %v997 = vmax.f32 %v925, 0.0
  %v998 = vmax.f32 %v930, 0.0
  %v999 = vmax.f32 %v933, 0.0
  %v1000 = vmax.f32 %v938, 0.0
  %v1001 = vmax.f32 %v941, 0.0
  %v1002 = vmax.f32 %v946, 0.0
  %v1003 = vmax.f32 %v949, 0.0
  %v1004 = vpack.c.bf16 %v953, %v952
  %v1005 = vpack.c.bf16 %v955, %v954
  %v1006 = vpack.c.bf16 %v957, %v956
  %v1007 = vpack.c.bf16 %v959, %v958
  %v1008 = vpack.c.bf16 %v961, %v960
  %v1009 = vpack.c.bf16 %v963, %v962
  %v1010 = vpack.c.bf16 %v965, %v964
  %v1011 = vpack.c.bf16 %v967, %v966
  %v1012 = vpack.c.bf16 %v969, %v968
  %v1013 = vpack.c.bf16 %v971, %v970
  %v1014 = vpack.c.bf16 %v973, %v972
  %v1015 = vpack.c.bf16 %v975, %v974
  %v1016 = vpack.c.bf16 %v977, %v976
  %v1017 = vpack.c.bf16 %v979, %v978
  %v1018 = vpack.c.bf16 %v981, %v980
  %v1019 = vpack.c.bf16 %v983, %v982
  %v1020 = vpack.c.bf16 %v985, %v984
  %v1021 = vpack.c.bf16 %v987, %v986
  %v1022 = vpack.c.bf16 %v989, %v988
  %v1023 = vpack.c.bf16 %v991, %v990
  %v1024 = vpack.c.bf16 %v993, %v992
  %v1025 = vpack.c.bf16 %v995, %v994
  %v1026 = vpack.c.bf16 %v997, %v996
  %v1027 = vpack.c.bf16 %v999, %v998
  %v1028 = vpack.c.bf16 %v1001, %v1000
  %v1029 = vpack.c.bf16 %v1003, %v1002
  %v1030 = vld [vmem:[%s5] sm:$0xf]
  %v1031 = vld [vmem:[%s5 + $0x4] sm:$0xf]
  %v1032 = vld [vmem:[%s5 + $0x8] sm:$0xf]
  %v1033 = vld [vmem:[%s5 + $0xc] sm:$0xf]
  %v1034 = vld [vmem:[%s5 + $0x10] sm:$0xf]
  %v1035 = vld [vmem:[%s5 + $0x14] sm:$0xf]
  %v1036 = vld [vmem:[%s5 + $0x18] sm:$0xf]
  %v1037 = vld [vmem:[%s5 + $0x1c] sm:$0xf]
  %v1038 = vld [vmem:[%s5 + $0x20] sm:$0xf]
  %v1039 = vld [vmem:[%s5 + $0x24] sm:$0xf]
  %v1040 = vld [vmem:[%s5 + $0x28] sm:$0xf]
  %v1041 = vld [vmem:[%s5 + $0x2c] sm:$0xf]
  %v1042 = vld [vmem:[%s5 + $0x30] sm:$0xf]
  %v1043 = vld [vmem:[%s5 + $0x34] sm:$0xf]
  %v1044 = vld [vmem:[%s5 + $0x38] sm:$0xf]
  %v1045 = vld [vmem:[%s5 + $0x3c] sm:$0xf]
  %v1046 = vld [vmem:[%s6] sm:$0xf]
  %v1047 = vld [vmem:[%s6 + $0x4] sm:$0xf]
  %v1048 = vld [vmem:[%s6 + $0x8] sm:$0xf]
  %v1049 = vld [vmem:[%s6 + $0xc] sm:$0xf]
  %v1050 = vld [vmem:[%s6 + $0x10] sm:$0xf]
  %v1051 = vld [vmem:[%s6 + $0x14] sm:$0xf]
  %v1052 = vld [vmem:[%s6 + $0x18] sm:$0xf]
  %v1053 = vld [vmem:[%s6 + $0x1c] sm:$0xf]
  %v1054 = vld [vmem:[%s6 + $0x20] sm:$0xf]
  %v1055 = vld [vmem:[%s6 + $0x24] sm:$0xf]
  %v1056 = vld [vmem:[%s6 + $0x28] sm:$0xf]
  %v1057 = vld [vmem:[%s6 + $0x2c] sm:$0xf]
  %v1058 = vld [vmem:[%s6 + $0x30] sm:$0xf]
  %v1059 = vld [vmem:[%s6 + $0x34] sm:$0xf]
  %v1060 = vld [vmem:[%s6 + $0x38] sm:$0xf]
  %v1061 = vld [vmem:[%s6 + $0x3c] sm:$0xf]
  %v1078 = vunpack.c.l.b16 %v1046
  %v1079 = vunpack.c.l.b16 %v1047
  %v1080 = vunpack.c.l.b16 %v1048
  %v1081 = vunpack.c.l.b16 %v1049
  %v1082 = vunpack.c.l.b16 %v1050
  %v1083 = vunpack.c.l.b16 %v1051
  %v1084 = vunpack.c.l.b16 %v1052
  %v1085 = vunpack.c.l.b16 %v1053
  %v1086 = vunpack.c.l.b16 %v1054
  %v1087 = vunpack.c.l.b16 %v1055
  %v1088 = vunpack.c.l.b16 %v1056
  %v1089 = vunpack.c.l.b16 %v1057
  %v1090 = vunpack.c.l.b16 %v1058
  %v1091 = vunpack.c.l.b16 %v1059
  %v1092 = vunpack.c.l.b16 %v1060
  %v1093 = vunpack.c.l.b16 %v1061
  %v1094 = vpack.c.b16 %v1079, %v1078
  %v1095 = vpack.c.b16 %v1081, %v1080
  %v1096 = vpack.c.b16 %v1083, %v1082
  %v1097 = vpack.c.b16 %v1085, %v1084
  %v1098 = vpack.c.b16 %v1087, %v1086
  %v1099 = vpack.c.b16 %v1089, %v1088
  %v1100 = vpack.c.b16 %v1091, %v1090
  %v1101 = vpack.c.b16 %v1093, %v1092
  %1110 = vmatprep.subr.bf16.mxu0 0
  %1111 = vmatpush1.bf16.msra.mxu0 %v1094
  %1112 = vmatprep.subr.bf16.mxu0 0
  %1113 = vmatpush1.bf16.msra.mxu0 %v1095
  %1114 = vmatprep.subr.bf16.mxu0 0
  %1115 = vmatpush1.bf16.msra.mxu0 %v1096
  %1116 = vmatprep.subr.bf16.mxu0 0
  %1117 = vmatpush1.bf16.msra.mxu0 %v1097
  %1118 = vmatprep.subr.bf16.mxu0 0
  %1119 = vmatpush1.bf16.msra.mxu0 %v1098
  %1120 = vmatprep.subr.bf16.mxu0 0
  %1121 = vmatpush1.bf16.msra.mxu0 %v1099
  %1122 = vmatprep.subr.bf16.mxu0 0
  %1123 = vmatpush1.bf16.msra.mxu0 %v1100
  %1124 = vmatprep.subr.bf16.mxu0 0
  %1125 = vmatpush1.bf16.msra.mxu0 %v1101
  %1126 = vmatprep.subr.bf16.mxu0 0
  %1127 = vmatpush1.bf16.msra.mxu0 0
  %1128 = vmatprep.subr.bf16.mxu0 0
  %1129 = vmatpush1.bf16.msra.mxu0 0
  %1130 = vmatprep.subr.bf16.mxu0 0
  %1131 = vmatpush1.bf16.msra.mxu0 0
  %1132 = vmatprep.subr.bf16.mxu0 0
  %1133 = vmatpush1.bf16.msra.mxu0 0
  %1134 = vmatprep.subr.bf16.mxu0 0
  %1135 = vmatpush1.bf16.msra.mxu0 0
  %1136 = vmatprep.subr.bf16.mxu0 0
  %1137 = vmatpush1.bf16.msra.mxu0 0
  %1138 = vmatprep.subr.bf16.mxu0 0
  %1139 = vmatpush1.bf16.msra.mxu0 0
  %1140 = vmatprep.subr.bf16.mxu0 0
  %1141 = vmatpush1.bf16.msra.mxu0 0
  %1142 = vmatprep.mubr.bf16.mxu0 0
  %1143 = vmatmul.mubr.bf16.gmra.mrb[0].mxu0 %v1017
  %v1144 = vpop.f32.mrb[0].mxu0
  %v1145 = vadd.f32 0.0, %v1144
  %v1146 = vpop.f32.mrb[0].mxu0
  %v1147 = vpop.f32.mrb[0].mxu0
  %v1148 = vadd.f32 0.0, %v1147
  %v1149 = vpop.f32.mrb[0].mxu0
  %1150 = vmatprep.mubr.bf16.mxu0 0
  %1151 = vmatmul.mubr.bf16.gmra.mrb[0].mxu0 %v1018
  %v1152 = vpop.f32.mrb[0].mxu0
  %v1153 = vadd.f32 0.0, %v1152
  %v1154 = vpop.f32.mrb[0].mxu0
  %v1155 = vpop.f32.mrb[0].mxu0
  %v1156 = vadd.f32 0.0, %v1155
  %v1157 = vpop.f32.mrb[0].mxu0
  %1158 = vmatprep.mubr.bf16.mxu0 0
  %1159 = vmatmul.mubr.bf16.gmra.mrb[0].mxu0 %v1019
  %v1160 = vpop.f32.mrb[0].mxu0
  %v1161 = vadd.f32 0.0, %v1160
  %v1162 = vpop.f32.mrb[0].mxu0
  %v1163 = vpop.f32.mrb[0].mxu0
  %v1164 = vadd.f32 0.0, %v1163
  %v1165 = vpop.f32.mrb[0].mxu0
  %1166 = vmatprep.mubr.bf16.mxu0 0
  %1167 = vmatmul.mubr.bf16.gmra.mrb[0].mxu0 %v1020
  %v1168 = vpop.f32.mrb[0].mxu0
  %v1169 = vadd.f32 0.0, %v1168
  %v1170 = vpop.f32.mrb[0].mxu0
  %v1171 = vpop.f32.mrb[0].mxu0
  %v1172 = vadd.f32 0.0, %v1171
  %v1173 = vpop.f32.mrb[0].mxu0
  %1174 = vmatprep.mubr.bf16.mxu0 0
  %1175 = vmatmul.mubr.bf16.gmra.mrb[0].mxu0 %v1021
  %v1176 = vpop.f32.mrb[0].mxu0
  %v1177 = vadd.f32 0.0, %v1176
  %v1178 = vpop.f32.mrb[0].mxu0
  %v1179 = vpop.f32.mrb[0].mxu0
  %v1180 = vadd.f32 0.0, %v1179
  %v1181 = vpop.f32.mrb[0].mxu0
  %1182 = vmatprep.mubr.bf16.mxu0 0
  %1183 = vmatmul.mubr.bf16.gmra.mrb[0].mxu0 %v1022
  %v1184 = vpop.f32.mrb[0].mxu0
  %v1185 = vadd.f32 0.0, %v1184
  %v1186 = vpop.f32.mrb[0].mxu0
  %v1187 = vpop.f32.mrb[0].mxu0
  %v1188 = vadd.f32 0.0, %v1187
  %v1189 = vpop.f32.mrb[0].mxu0
  %1190 = vmatprep.mubr.bf16.mxu0 0
  %1191 = vmatmul.mubr.bf16.gmra.mrb[0].mxu0 %v1023
  %v1192 = vpop.f32.mrb[0].mxu0
  %v1193 = vadd.f32 0.0, %v1192
  %v1194 = vpop.f32.mrb[0].mxu0
  %v1195 = vpop.f32.mrb[0].mxu0
  %v1196 = vadd.f32 0.0, %v1195
  %v1197 = vpop.f32.mrb[0].mxu0
  %1198 = vmatprep.mubr.bf16.mxu0 0
  %1199 = vmatmul.mubr.bf16.gmra.mrb[0].mxu0 %v1024
  %v1200 = vpop.f32.mrb[0].mxu0
  %v1201 = vadd.f32 0.0, %v1200
  %v1202 = vpop.f32.mrb[0].mxu0
  %v1203 = vpop.f32.mrb[0].mxu0
  %v1204 = vadd.f32 0.0, %v1203
  %v1205 = vpop.f32.mrb[0].mxu0
  %1206 = vmatprep.mubr.bf16.mxu0 0
  %1207 = vmatmul.mubr.bf16.gmra.mrb[0].mxu0 %v1025
  %v1208 = vpop.f32.mrb[0].mxu0
  %v1209 = vadd.f32 0.0, %v1208
  %v1210 = vpop.f32.mrb[0].mxu0
  %v1211 = vpop.f32.mrb[0].mxu0
  %v1212 = vadd.f32 0.0, %v1211
  %v1213 = vpop.f32.mrb[0].mxu0
  %1214 = vmatprep.mubr.bf16.mxu0 0
  %1215 = vmatmul.mubr.bf16.gmra.mrb[0].mxu0 %v1026
  %v1216 = vpop.f32.mrb[0].mxu0
  %v1217 = vadd.f32 0.0, %v1216
  %v1218 = vpop.f32.mrb[0].mxu0
  %v1219 = vpop.f32.mrb[0].mxu0
  %v1220 = vadd.f32 0.0, %v1219
  %v1221 = vpop.f32.mrb[0].mxu0
  %1222 = vmatprep.mubr.bf16.mxu0 0
  %1223 = vmatmul.mubr.bf16.gmra.mrb[0].mxu0 %v1027
  %v1224 = vpop.f32.mrb[0].mxu0
  %v1225 = vadd.f32 0.0, %v1224
  %v1226 = vpop.f32.mrb[0].mxu0
  %v1227 = vpop.f32.mrb[0].mxu0
  %v1228 = vadd.f32 0.0, %v1227
  %v1229 = vpop.f32.mrb[0].mxu0
  %1230 = vmatprep.mubr.bf16.mxu0 0
  %1231 = vmatmul.mubr.bf16.gmra.mrb[0].mxu0 %v1028
  %v1232 = vpop.f32.mrb[0].mxu0
  %v1233 = vadd.f32 0.0, %v1232
  %v1234 = vpop.f32.mrb[0].mxu0
  %v1235 = vpop.f32.mrb[0].mxu0
  %v1236 = vadd.f32 0.0, %v1235
  %v1237 = vpop.f32.mrb[0].mxu0
  %1238 = vmatprep.mubr.bf16.mxu0 0
  %1239 = vmatmul.mubr.bf16.gmra.mrb[0].mxu0 %v1029
  %v1240 = vpop.f32.mrb[0].mxu0
  %v1241 = vadd.f32 0.0, %v1240
  %v1242 = vpop.f32.mrb[0].mxu0
  %v1243 = vpop.f32.mrb[0].mxu0
  %v1244 = vadd.f32 0.0, %v1243
  %v1245 = vpop.f32.mrb[0].mxu0
  %1246 = vdwg.mxu0
  %v1263 = vunpack.c.l.b16 %v1030
  %v1264 = vunpack.c.l.b16 %v1031
  %v1265 = vunpack.c.l.b16 %v1032
  %v1266 = vunpack.c.l.b16 %v1033
  %v1267 = vunpack.c.l.b16 %v1034
  %v1268 = vunpack.c.l.b16 %v1035
  %v1269 = vunpack.c.l.b16 %v1036
  %v1270 = vunpack.c.l.b16 %v1037
  %v1271 = vunpack.c.l.b16 %v1038
  %v1272 = vunpack.c.l.b16 %v1039
  %v1273 = vunpack.c.l.b16 %v1040
  %v1274 = vunpack.c.l.b16 %v1041
  %v1275 = vunpack.c.l.b16 %v1042
  %v1276 = vunpack.c.l.b16 %v1043
  %v1277 = vunpack.c.l.b16 %v1044
  %v1278 = vunpack.c.l.b16 %v1045
  %v1279 = vpack.c.b16 %v1264, %v1263
  %v1280 = vpack.c.b16 %v1266, %v1265
  %v1281 = vpack.c.b16 %v1268, %v1267
  %v1282 = vpack.c.b16 %v1270, %v1269
  %v1283 = vpack.c.b16 %v1272, %v1271
  %v1284 = vpack.c.b16 %v1274, %v1273
  %v1285 = vpack.c.b16 %v1276, %v1275
  %v1286 = vpack.c.b16 %v1278, %v1277
  %1295 = vmatprep.subr.bf16.mxu0 0
  %1296 = vmatpush1.bf16.msra.mxu0 %v1279
  %1297 = vmatprep.subr.bf16.mxu0 0
  %1298 = vmatpush1.bf16.msra.mxu0 %v1280
  %1299 = vmatprep.subr.bf16.mxu0 0
  %1300 = vmatpush1.bf16.msra.mxu0 %v1281
  %1301 = vmatprep.subr.bf16.mxu0 0
  %1302 = vmatpush1.bf16.msra.mxu0 %v1282
  %1303 = vmatprep.subr.bf16.mxu0 0
  %1304 = vmatpush1.bf16.msra.mxu0 %v1283
  %1305 = vmatprep.subr.bf16.mxu0 0
  %1306 = vmatpush1.bf16.msra.mxu0 %v1284
  %1307 = vmatprep.subr.bf16.mxu0 0
  %1308 = vmatpush1.bf16.msra.mxu0 %v1285
  %1309 = vmatprep.subr.bf16.mxu0 0
  %1310 = vmatpush1.bf16.msra.mxu0 %v1286
  %1311 = vmatprep.subr.bf16.mxu0 0
  %1312 = vmatpush1.bf16.msra.mxu0 0
  %1313 = vmatprep.subr.bf16.mxu0 0
  %1314 = vmatpush1.bf16.msra.mxu0 0
  %1315 = vmatprep.subr.bf16.mxu0 0
  %1316 = vmatpush1.bf16.msra.mxu0 0
  %1317 = vmatprep.subr.bf16.mxu0 0
  %1318 = vmatpush1.bf16.msra.mxu0 0
  %1319 = vmatprep.subr.bf16.mxu0 0
  %1320 = vmatpush1.bf16.msra.mxu0 0
  %1321 = vmatprep.subr.bf16.mxu0 0
  %1322 = vmatpush1.bf16.msra.mxu0 0
  %1323 = vmatprep.subr.bf16.mxu0 0
  %1324 = vmatpush1.bf16.msra.mxu0 0
  %1325 = vmatprep.subr.bf16.mxu0 0
  %1326 = vmatpush1.bf16.msra.mxu0 0
  %1327 = vmatprep.mubr.bf16.mxu0 0
  %1328 = vmatmul.mubr.bf16.gmra.mrb[0].mxu0 %v1004
  %v1329 = vpop.f32.mrb[0].mxu0
  %v1330 = vadd.f32 %v1145, %v1329
  %v1331 = vpop.f32.mrb[0].mxu0
  %v1332 = vpop.f32.mrb[0].mxu0
  %v1333 = vadd.f32 %v1148, %v1332
  %v1334 = vpop.f32.mrb[0].mxu0
  %1335 = vmatprep.mubr.bf16.mxu0 0
  %1336 = vmatmul.mubr.bf16.gmra.mrb[0].mxu0 %v1005
  %v1337 = vpop.f32.mrb[0].mxu0
  %v1338 = vadd.f32 %v1153, %v1337
  %v1339 = vpop.f32.mrb[0].mxu0
  %v1340 = vpop.f32.mrb[0].mxu0
  %v1341 = vadd.f32 %v1156, %v1340
  %v1342 = vpop.f32.mrb[0].mxu0
  %1343 = vmatprep.mubr.bf16.mxu0 0
  %1344 = vmatmul.mubr.bf16.gmra.mrb[0].mxu0 %v1006
  %v1345 = vpop.f32.mrb[0].mxu0
  %v1346 = vadd.f32 %v1161, %v1345
  %v1347 = vpop.f32.mrb[0].mxu0
  %v1348 = vpop.f32.mrb[0].mxu0
  %v1349 = vadd.f32 %v1164, %v1348
  %v1350 = vpop.f32.mrb[0].mxu0
  %1351 = vmatprep.mubr.bf16.mxu0 0
  %1352 = vmatmul.mubr.bf16.gmra.mrb[0].mxu0 %v1007
  %v1353 = vpop.f32.mrb[0].mxu0
  %v1354 = vadd.f32 %v1169, %v1353
  %v1355 = vpop.f32.mrb[0].mxu0
  %v1356 = vpop.f32.mrb[0].mxu0
  %v1357 = vadd.f32 %v1172, %v1356
  %v1358 = vpop.f32.mrb[0].mxu0
  %1359 = vmatprep.mubr.bf16.mxu0 0
  %1360 = vmatmul.mubr.bf16.gmra.mrb[0].mxu0 %v1008
  %v1361 = vpop.f32.mrb[0].mxu0
  %v1362 = vadd.f32 %v1177, %v1361
  %v1363 = vpop.f32.mrb[0].mxu0
  %v1364 = vpop.f32.mrb[0].mxu0
  %v1365 = vadd.f32 %v1180, %v1364
  %v1366 = vpop.f32.mrb[0].mxu0
  %1367 = vmatprep.mubr.bf16.mxu0 0
  %1368 = vmatmul.mubr.bf16.gmra.mrb[0].mxu0 %v1009
  %v1369 = vpop.f32.mrb[0].mxu0
  %v1370 = vadd.f32 %v1185, %v1369
  %v1371 = vpop.f32.mrb[0].mxu0
  %v1372 = vpop.f32.mrb[0].mxu0
  %v1373 = vadd.f32 %v1188, %v1372
  %v1374 = vpop.f32.mrb[0].mxu0
  %1375 = vmatprep.mubr.bf16.mxu0 0
  %1376 = vmatmul.mubr.bf16.gmra.mrb[0].mxu0 %v1010
  %v1377 = vpop.f32.mrb[0].mxu0
  %v1378 = vadd.f32 %v1193, %v1377
  %v1379 = vpop.f32.mrb[0].mxu0
  %v1380 = vpop.f32.mrb[0].mxu0
  %v1381 = vadd.f32 %v1196, %v1380
  %v1382 = vpop.f32.mrb[0].mxu0
  %1383 = vmatprep.mubr.bf16.mxu0 0
  %1384 = vmatmul.mubr.bf16.gmra.mrb[0].mxu0 %v1011
  %v1385 = vpop.f32.mrb[0].mxu0
  %v1386 = vadd.f32 %v1201, %v1385
  %v1387 = vpop.f32.mrb[0].mxu0
  %v1388 = vpop.f32.mrb[0].mxu0
  %v1389 = vadd.f32 %v1204, %v1388
  %v1390 = vpop.f32.mrb[0].mxu0
  %1391 = vmatprep.mubr.bf16.mxu0 0
  %1392 = vmatmul.mubr.bf16.gmra.mrb[0].mxu0 %v1012
  %v1393 = vpop.f32.mrb[0].mxu0
  %v1394 = vadd.f32 %v1209, %v1393
  %v1395 = vpop.f32.mrb[0].mxu0
  %v1396 = vpop.f32.mrb[0].mxu0
  %v1397 = vadd.f32 %v1212, %v1396
  %v1398 = vpop.f32.mrb[0].mxu0
  %1399 = vmatprep.mubr.bf16.mxu0 0
  %1400 = vmatmul.mubr.bf16.gmra.mrb[0].mxu0 %v1013
  %v1401 = vpop.f32.mrb[0].mxu0
  %v1402 = vadd.f32 %v1217, %v1401
  %v1403 = vpop.f32.mrb[0].mxu0
  %v1404 = vpop.f32.mrb[0].mxu0
  %v1405 = vadd.f32 %v1220, %v1404
  %v1406 = vpop.f32.mrb[0].mxu0
  %1407 = vmatprep.mubr.bf16.mxu0 0
  %1408 = vmatmul.mubr.bf16.gmra.mrb[0].mxu0 %v1014
  %v1409 = vpop.f32.mrb[0].mxu0
  %v1410 = vadd.f32 %v1225, %v1409
  %v1411 = vpop.f32.mrb[0].mxu0
  %v1412 = vpop.f32.mrb[0].mxu0
  %v1413 = vadd.f32 %v1228, %v1412
  %v1414 = vpop.f32.mrb[0].mxu0
  %1415 = vmatprep.mubr.bf16.mxu0 0
  %1416 = vmatmul.mubr.bf16.gmra.mrb[0].mxu0 %v1015
  %v1417 = vpop.f32.mrb[0].mxu0
  %v1418 = vadd.f32 %v1233, %v1417
  %v1419 = vpop.f32.mrb[0].mxu0
  %v1420 = vpop.f32.mrb[0].mxu0
  %v1421 = vadd.f32 %v1236, %v1420
  %v1422 = vpop.f32.mrb[0].mxu0
  %1423 = vmatprep.mubr.bf16.mxu0 0
  %1424 = vmatmul.mubr.bf16.gmra.mrb[0].mxu0 %v1016
  %v1425 = vpop.f32.mrb[0].mxu0
  %v1426 = vadd.f32 %v1241, %v1425
  %v1427 = vpop.f32.mrb[0].mxu0
  %v1428 = vpop.f32.mrb[0].mxu0
  %v1429 = vadd.f32 %v1244, %v1428
  %v1430 = vpop.f32.mrb[0].mxu0
  %1431 = vdwg.mxu0
  %v1432 = vld [vmem:[%s7] sm:$0x1]
  %v1434 = vlaneseq
  %v1435 = vshrl.u32 %v1434, 7
  %v1436 = vsub.s32 0, %v1435
  %v1437 = vrot.slane %v1432, %v1436
  %v1439 = vadd.f32 %v1330, %v1437
  %v1440 = vadd.f32 %v1333, %v1437
  %v1441 = vadd.f32 %v1338, %v1437
  %v1442 = vadd.f32 %v1341, %v1437
  %v1443 = vadd.f32 %v1346, %v1437
  %v1444 = vadd.f32 %v1349, %v1437
  %v1445 = vadd.f32 %v1354, %v1437
  %v1446 = vadd.f32 %v1357, %v1437
  %v1447 = vadd.f32 %v1362, %v1437
  %v1448 = vadd.f32 %v1365, %v1437
  %v1449 = vadd.f32 %v1370, %v1437
  %v1450 = vadd.f32 %v1373, %v1437
  %v1451 = vadd.f32 %v1378, %v1437
  %v1452 = vadd.f32 %v1381, %v1437
  %v1453 = vadd.f32 %v1386, %v1437
  %v1454 = vadd.f32 %v1389, %v1437
  %v1455 = vadd.f32 %v1394, %v1437
  %v1456 = vadd.f32 %v1397, %v1437
  %v1457 = vadd.f32 %v1402, %v1437
  %v1458 = vadd.f32 %v1405, %v1437
  %v1459 = vadd.f32 %v1410, %v1437
  %v1460 = vadd.f32 %v1413, %v1437
  %v1461 = vadd.f32 %v1418, %v1437
  %v1462 = vadd.f32 %v1421, %v1437
  %v1463 = vadd.f32 %v1426, %v1437
  %v1464 = vadd.f32 %v1429, %v1437
  %v1465 = vmax.f32 %v1439, 0.0
  %v1466 = vmax.f32 %v1440, 0.0
  %v1467 = vmax.f32 %v1441, 0.0
  %v1468 = vmax.f32 %v1442, 0.0
  %v1469 = vmax.f32 %v1443, 0.0
  %v1470 = vmax.f32 %v1444, 0.0
  %v1471 = vmax.f32 %v1445, 0.0
  %v1472 = vmax.f32 %v1446, 0.0
  %v1473 = vmax.f32 %v1447, 0.0
  %v1474 = vmax.f32 %v1448, 0.0
  %v1475 = vmax.f32 %v1449, 0.0
  %v1476 = vmax.f32 %v1450, 0.0
  %v1477 = vmax.f32 %v1451, 0.0
  %v1478 = vmax.f32 %v1452, 0.0
  %v1479 = vmax.f32 %v1453, 0.0
  %v1480 = vmax.f32 %v1454, 0.0
  %v1481 = vmax.f32 %v1455, 0.0
  %v1482 = vmax.f32 %v1456, 0.0
  %v1483 = vmax.f32 %v1457, 0.0
  %v1484 = vmax.f32 %v1458, 0.0
  %v1485 = vmax.f32 %v1459, 0.0
  %v1486 = vmax.f32 %v1460, 0.0
  %v1487 = vmax.f32 %v1461, 0.0
  %v1488 = vmax.f32 %v1462, 0.0
  %v1489 = vmax.f32 %v1463, 0.0
  %v1490 = vmax.f32 %v1464, 0.0
  %v1491 = vpack.c.bf16 %v1466, %v1465
  %v1492 = vpack.c.bf16 %v1468, %v1467
  %v1493 = vpack.c.bf16 %v1470, %v1469
  %v1494 = vpack.c.bf16 %v1472, %v1471
  %v1495 = vpack.c.bf16 %v1474, %v1473
  %v1496 = vpack.c.bf16 %v1476, %v1475
  %v1497 = vpack.c.bf16 %v1478, %v1477
  %v1498 = vpack.c.bf16 %v1480, %v1479
  %v1499 = vpack.c.bf16 %v1482, %v1481
  %v1500 = vpack.c.bf16 %v1484, %v1483
  %v1501 = vpack.c.bf16 %v1486, %v1485
  %v1502 = vpack.c.bf16 %v1488, %v1487
  %v1503 = vpack.c.bf16 %v1490, %v1489
  %v1504 = vld [vmem:[%s8] sm:$0xf]
  %v1505 = vld [vmem:[%s8 + $0x4] sm:$0xf]
  %v1506 = vld [vmem:[%s8 + $0x8] sm:$0xf]
  %v1507 = vld [vmem:[%s8 + $0xc] sm:$0xf]
  %v1508 = vld [vmem:[%s8 + $0x10] sm:$0xf]
  %v1509 = vld [vmem:[%s8 + $0x14] sm:$0xf]
  %v1510 = vld [vmem:[%s8 + $0x18] sm:$0xf]
  %v1511 = vld [vmem:[%s8 + $0x1c] sm:$0xf]
  %v1512 = vld [vmem:[%s8 + $0x20] sm:$0xf]
  %v1513 = vld [vmem:[%s8 + $0x24] sm:$0xf]
  %v1514 = vld [vmem:[%s8 + $0x28] sm:$0xf]
  %v1515 = vld [vmem:[%s8 + $0x2c] sm:$0xf]
  %v1516 = vld [vmem:[%s8 + $0x30] sm:$0xf]
  %v1517 = vld [vmem:[%s8 + $0x34] sm:$0xf]
  %v1518 = vld [vmem:[%s8 + $0x38] sm:$0xf]
  %v1519 = vld [vmem:[%s8 + $0x3c] sm:$0xf]
  %v1520 = vld [vmem:[%s9] sm:$0x1]
  %v1522 = vlaneseq
  %v1523 = vshrl.u32 %v1522, 7
  %v1524 = vsub.s32 0, %v1523
  %v1525 = vrot.slane %v1520, %v1524
  %v1543 = vunpack.c.l.b16 %v1504
  %v1544 = vunpack.c.l.b16 %v1505
  %v1545 = vunpack.c.l.b16 %v1506
  %v1546 = vunpack.c.l.b16 %v1507
  %v1547 = vunpack.c.l.b16 %v1508
  %v1548 = vunpack.c.l.b16 %v1509
  %v1549 = vunpack.c.l.b16 %v1510
  %v1550 = vunpack.c.l.b16 %v1511
  %v1551 = vunpack.c.l.b16 %v1512
  %v1552 = vunpack.c.l.b16 %v1513
  %v1553 = vunpack.c.l.b16 %v1514
  %v1554 = vunpack.c.l.b16 %v1515
  %v1555 = vunpack.c.l.b16 %v1516
  %v1556 = vunpack.c.l.b16 %v1517
  %v1557 = vunpack.c.l.b16 %v1518
  %v1558 = vunpack.c.l.b16 %v1519
  %v1559 = vpack.c.b16 %v1544, %v1543
  %v1560 = vpack.c.b16 %v1546, %v1545
  %v1561 = vpack.c.b16 %v1548, %v1547
  %v1562 = vpack.c.b16 %v1550, %v1549
  %v1563 = vpack.c.b16 %v1552, %v1551
  %v1564 = vpack.c.b16 %v1554, %v1553
  %v1565 = vpack.c.b16 %v1556, %v1555
  %v1566 = vpack.c.b16 %v1558, %v1557
  %1575 = vmatprep.subr.bf16.mxu0 0
  %1576 = vmatpush1.bf16.msra.mxu0 %v1559
  %1577 = vmatprep.subr.bf16.mxu0 0
  %1578 = vmatpush1.bf16.msra.mxu0 %v1560
  %1579 = vmatprep.subr.bf16.mxu0 0
  %1580 = vmatpush1.bf16.msra.mxu0 %v1561
  %1581 = vmatprep.subr.bf16.mxu0 0
  %1582 = vmatpush1.bf16.msra.mxu0 %v1562
  %1583 = vmatprep.subr.bf16.mxu0 0
  %1584 = vmatpush1.bf16.msra.mxu0 %v1563
  %1585 = vmatprep.subr.bf16.mxu0 0
  %1586 = vmatpush1.bf16.msra.mxu0 %v1564
  %1587 = vmatprep.subr.bf16.mxu0 0
  %1588 = vmatpush1.bf16.msra.mxu0 %v1565
  %1589 = vmatprep.subr.bf16.mxu0 0
  %1590 = vmatpush1.bf16.msra.mxu0 %v1566
  %1591 = vmatprep.subr.bf16.mxu0 0
  %1592 = vmatpush1.bf16.msra.mxu0 0
  %1593 = vmatprep.subr.bf16.mxu0 0
  %1594 = vmatpush1.bf16.msra.mxu0 0
  %1595 = vmatprep.subr.bf16.mxu0 0
  %1596 = vmatpush1.bf16.msra.mxu0 0
  %1597 = vmatprep.subr.bf16.mxu0 0
  %1598 = vmatpush1.bf16.msra.mxu0 0
  %1599 = vmatprep.subr.bf16.mxu0 0
  %1600 = vmatpush1.bf16.msra.mxu0 0
  %1601 = vmatprep.subr.bf16.mxu0 0
  %1602 = vmatpush1.bf16.msra.mxu0 0
  %1603 = vmatprep.subr.bf16.mxu0 0
  %1604 = vmatpush1.bf16.msra.mxu0 0
  %1605 = vmatprep.subr.bf16.mxu0 0
  %1606 = vmatpush1.bf16.msra.mxu0 0
  %1607 = vmatprep.mubr.bf16.mxu0 0
  %1608 = vmatmul.mubr.bf16.gmra.mrb[0].mxu0 %v1491
  %v1609 = vpop.f32.mrb[0].mxu0
  %v1610 = vadd.f32 %v1525, %v1609
  %v1611 = vpop.f32.mrb[0].mxu0
  %v1612 = vpop.f32.mrb[0].mxu0
  %v1613 = vadd.f32 %v1525, %v1612
  %v1614 = vpop.f32.mrb[0].mxu0
  %1615 = vmatprep.mubr.bf16.mxu0 0
  %1616 = vmatmul.mubr.bf16.gmra.mrb[0].mxu0 %v1492
  %v1617 = vpop.f32.mrb[0].mxu0
  %v1618 = vadd.f32 %v1525, %v1617
  %v1619 = vpop.f32.mrb[0].mxu0
  %v1620 = vpop.f32.mrb[0].mxu0
  %v1621 = vadd.f32 %v1525, %v1620
  %v1622 = vpop.f32.mrb[0].mxu0
  %1623 = vmatprep.mubr.bf16.mxu0 0
  %1624 = vmatmul.mubr.bf16.gmra.mrb[0].mxu0 %v1493
  %v1625 = vpop.f32.mrb[0].mxu0
  %v1626 = vadd.f32 %v1525, %v1625
  %v1627 = vpop.f32.mrb[0].mxu0
  %v1628 = vpop.f32.mrb[0].mxu0
  %v1629 = vadd.f32 %v1525, %v1628
  %v1630 = vpop.f32.mrb[0].mxu0
  %1631 = vmatprep.mubr.bf16.mxu0 0
  %1632 = vmatmul.mubr.bf16.gmra.mrb[0].mxu0 %v1494
  %v1633 = vpop.f32.mrb[0].mxu0
  %v1634 = vadd.f32 %v1525, %v1633
  %v1635 = vpop.f32.mrb[0].mxu0
  %v1636 = vpop.f32.mrb[0].mxu0
  %v1637 = vadd.f32 %v1525, %v1636
  %v1638 = vpop.f32.mrb[0].mxu0
  %1639 = vmatprep.mubr.bf16.mxu0 0
  %1640 = vmatmul.mubr.bf16.gmra.mrb[0].mxu0 %v1495
  %v1641 = vpop.f32.mrb[0].mxu0
  %v1642 = vadd.f32 %v1525, %v1641
  %v1643 = vpop.f32.mrb[0].mxu0
  %v1644 = vpop.f32.mrb[0].mxu0
  %v1645 = vadd.f32 %v1525, %v1644
  %v1646 = vpop.f32.mrb[0].mxu0
  %1647 = vmatprep.mubr.bf16.mxu0 0
  %1648 = vmatmul.mubr.bf16.gmra.mrb[0].mxu0 %v1496
  %v1649 = vpop.f32.mrb[0].mxu0
  %v1650 = vadd.f32 %v1525, %v1649
  %v1651 = vpop.f32.mrb[0].mxu0
  %v1652 = vpop.f32.mrb[0].mxu0
  %v1653 = vadd.f32 %v1525, %v1652
  %v1654 = vpop.f32.mrb[0].mxu0
  %1655 = vmatprep.mubr.bf16.mxu0 0
  %1656 = vmatmul.mubr.bf16.gmra.mrb[0].mxu0 %v1497
  %v1657 = vpop.f32.mrb[0].mxu0
  %v1658 = vadd.f32 %v1525, %v1657
  %v1659 = vpop.f32.mrb[0].mxu0
  %v1660 = vpop.f32.mrb[0].mxu0
  %v1661 = vadd.f32 %v1525, %v1660
  %v1662 = vpop.f32.mrb[0].mxu0
  %1663 = vmatprep.mubr.bf16.mxu0 0
  %1664 = vmatmul.mubr.bf16.gmra.mrb[0].mxu0 %v1498
  %v1665 = vpop.f32.mrb[0].mxu0
  %v1666 = vadd.f32 %v1525, %v1665
  %v1667 = vpop.f32.mrb[0].mxu0
  %v1668 = vpop.f32.mrb[0].mxu0
  %v1669 = vadd.f32 %v1525, %v1668
  %v1670 = vpop.f32.mrb[0].mxu0
  %1671 = vmatprep.mubr.bf16.mxu0 0
  %1672 = vmatmul.mubr.bf16.gmra.mrb[0].mxu0 %v1499
  %v1673 = vpop.f32.mrb[0].mxu0
  %v1674 = vadd.f32 %v1525, %v1673
  %v1675 = vpop.f32.mrb[0].mxu0
  %v1676 = vpop.f32.mrb[0].mxu0
  %v1677 = vadd.f32 %v1525, %v1676
  %v1678 = vpop.f32.mrb[0].mxu0
  %1679 = vmatprep.mubr.bf16.mxu0 0
  %1680 = vmatmul.mubr.bf16.gmra.mrb[0].mxu0 %v1500
  %v1681 = vpop.f32.mrb[0].mxu0
  %v1682 = vadd.f32 %v1525, %v1681
  %v1683 = vpop.f32.mrb[0].mxu0
  %v1684 = vpop.f32.mrb[0].mxu0
  %v1685 = vadd.f32 %v1525, %v1684
  %v1686 = vpop.f32.mrb[0].mxu0
  %1687 = vmatprep.mubr.bf16.mxu0 0
  %1688 = vmatmul.mubr.bf16.gmra.mrb[0].mxu0 %v1501
  %v1689 = vpop.f32.mrb[0].mxu0
  %v1690 = vadd.f32 %v1525, %v1689
  %v1691 = vpop.f32.mrb[0].mxu0
  %v1692 = vpop.f32.mrb[0].mxu0
  %v1693 = vadd.f32 %v1525, %v1692
  %v1694 = vpop.f32.mrb[0].mxu0
  %1695 = vmatprep.mubr.bf16.mxu0 0
  %1696 = vmatmul.mubr.bf16.gmra.mrb[0].mxu0 %v1502
  %v1697 = vpop.f32.mrb[0].mxu0
  %v1698 = vadd.f32 %v1525, %v1697
  %v1699 = vpop.f32.mrb[0].mxu0
  %v1700 = vpop.f32.mrb[0].mxu0
  %v1701 = vadd.f32 %v1525, %v1700
  %v1702 = vpop.f32.mrb[0].mxu0
  %1703 = vmatprep.mubr.bf16.mxu0 0
  %1704 = vmatmul.mubr.bf16.gmra.mrb[0].mxu0 %v1503
  %v1705 = vpop.f32.mrb[0].mxu0
  %v1706 = vadd.f32 %v1525, %v1705
  %v1707 = vpop.f32.mrb[0].mxu0
  %v1708 = vpop.f32.mrb[0].mxu0
  %v1709 = vadd.f32 %v1525, %v1708
  %v1710 = vpop.f32.mrb[0].mxu0
  %1711 = vdwg.mxu0
  %v1712 = vmax.f32 %v1610, 0.0
  %v1713 = vmax.f32 %v1613, 0.0
  %v1714 = vmax.f32 %v1618, 0.0
  %v1715 = vmax.f32 %v1621, 0.0
  %v1716 = vmax.f32 %v1626, 0.0
  %v1717 = vmax.f32 %v1629, 0.0
  %v1718 = vmax.f32 %v1634, 0.0
  %v1719 = vmax.f32 %v1637, 0.0
  %v1720 = vmax.f32 %v1642, 0.0
  %v1721 = vmax.f32 %v1645, 0.0
  %v1722 = vmax.f32 %v1650, 0.0
  %v1723 = vmax.f32 %v1653, 0.0
  %v1724 = vmax.f32 %v1658, 0.0
  %v1725 = vmax.f32 %v1661, 0.0
  %v1726 = vmax.f32 %v1666, 0.0
  %v1727 = vmax.f32 %v1669, 0.0
  %v1728 = vmax.f32 %v1674, 0.0
  %v1729 = vmax.f32 %v1677, 0.0
  %v1730 = vmax.f32 %v1682, 0.0
  %v1731 = vmax.f32 %v1685, 0.0
  %v1732 = vmax.f32 %v1690, 0.0
  %v1733 = vmax.f32 %v1693, 0.0
  %v1734 = vmax.f32 %v1698, 0.0
  %v1735 = vmax.f32 %v1701, 0.0
  %v1736 = vmax.f32 %v1706, 0.0
  %v1737 = vmax.f32 %v1709, 0.0
  %v1738 = vpack.c.bf16 %v1713, %v1712
  %v1739 = vpack.c.bf16 %v1715, %v1714
  %v1740 = vpack.c.bf16 %v1717, %v1716
  %v1741 = vpack.c.bf16 %v1719, %v1718
  %v1742 = vpack.c.bf16 %v1721, %v1720
  %v1743 = vpack.c.bf16 %v1723, %v1722
  %v1744 = vpack.c.bf16 %v1725, %v1724
  %v1745 = vpack.c.bf16 %v1727, %v1726
  %v1746 = vpack.c.bf16 %v1729, %v1728
  %v1747 = vpack.c.bf16 %v1731, %v1730
  %v1748 = vpack.c.bf16 %v1733, %v1732
  %v1749 = vpack.c.bf16 %v1735, %v1734
  %v1750 = vpack.c.bf16 %v1737, %v1736
  %v1751 = vld [vmem:[%s10] sm:$0xf]
  %v1752 = vld [vmem:[%s10 + $0x4] sm:$0xf]
  %v1753 = vld [vmem:[%s10 + $0x8] sm:$0xf]
  %v1754 = vld [vmem:[%s10 + $0xc] sm:$0xf]
  %v1755 = vld [vmem:[%s10 + $0x10] sm:$0xf]
  %v1756 = vld [vmem:[%s10 + $0x14] sm:$0xf]
  %v1757 = vld [vmem:[%s10 + $0x18] sm:$0xf]
  %v1758 = vld [vmem:[%s10 + $0x1c] sm:$0xf]
  %v1759 = vld [vmem:[%s10 + $0x20] sm:$0xf]
  %v1760 = vld [vmem:[%s10 + $0x24] sm:$0xf]
  %v1761 = vld [vmem:[%s10 + $0x28] sm:$0xf]
  %v1762 = vld [vmem:[%s10 + $0x2c] sm:$0xf]
  %v1763 = vld [vmem:[%s10 + $0x30] sm:$0xf]
  %v1764 = vld [vmem:[%s10 + $0x34] sm:$0xf]
  %v1765 = vld [vmem:[%s10 + $0x38] sm:$0xf]
  %v1766 = vld [vmem:[%s10 + $0x3c] sm:$0xf]
  %v1767 = vld [vmem:[%s11] sm:$0x1]
  %v1769 = vlaneseq
  %v1770 = vshrl.u32 %v1769, 7
  %v1771 = vsub.s32 0, %v1770
  %v1772 = vrot.slane %v1767, %v1771
  %v1790 = vunpack.c.l.b16 %v1751
  %v1791 = vunpack.c.l.b16 %v1752
  %v1792 = vunpack.c.l.b16 %v1753
  %v1793 = vunpack.c.l.b16 %v1754
  %v1794 = vunpack.c.l.b16 %v1755
  %v1795 = vunpack.c.l.b16 %v1756
  %v1796 = vunpack.c.l.b16 %v1757
  %v1797 = vunpack.c.l.b16 %v1758
  %v1798 = vunpack.c.l.b16 %v1759
  %v1799 = vunpack.c.l.b16 %v1760
  %v1800 = vunpack.c.l.b16 %v1761
  %v1801 = vunpack.c.l.b16 %v1762
  %v1802 = vunpack.c.l.b16 %v1763
  %v1803 = vunpack.c.l.b16 %v1764
  %v1804 = vunpack.c.l.b16 %v1765
  %v1805 = vunpack.c.l.b16 %v1766
  %v1806 = vpack.c.b16 %v1791, %v1790
  %v1807 = vpack.c.b16 %v1793, %v1792
  %v1808 = vpack.c.b16 %v1795, %v1794
  %v1809 = vpack.c.b16 %v1797, %v1796
  %v1810 = vpack.c.b16 %v1799, %v1798
  %v1811 = vpack.c.b16 %v1801, %v1800
  %v1812 = vpack.c.b16 %v1803, %v1802
  %v1813 = vpack.c.b16 %v1805, %v1804
  %1822 = vmatprep.subr.bf16.mxu0 0
  %1823 = vmatpush1.bf16.msra.mxu0 %v1806
  %1824 = vmatprep.subr.bf16.mxu0 0
  %1825 = vmatpush1.bf16.msra.mxu0 %v1807
  %1826 = vmatprep.subr.bf16.mxu0 0
  %1827 = vmatpush1.bf16.msra.mxu0 %v1808
  %1828 = vmatprep.subr.bf16.mxu0 0
  %1829 = vmatpush1.bf16.msra.mxu0 %v1809
  %1830 = vmatprep.subr.bf16.mxu0 0
  %1831 = vmatpush1.bf16.msra.mxu0 %v1810
  %1832 = vmatprep.subr.bf16.mxu0 0
  %1833 = vmatpush1.bf16.msra.mxu0 %v1811
  %1834 = vmatprep.subr.bf16.mxu0 0
  %1835 = vmatpush1.bf16.msra.mxu0 %v1812
  %1836 = vmatprep.subr.bf16.mxu0 0
  %1837 = vmatpush1.bf16.msra.mxu0 %v1813
  %1838 = vmatprep.subr.bf16.mxu0 0
  %1839 = vmatpush1.bf16.msra.mxu0 0
  %1840 = vmatprep.subr.bf16.mxu0 0
  %1841 = vmatpush1.bf16.msra.mxu0 0
  %1842 = vmatprep.subr.bf16.mxu0 0
  %1843 = vmatpush1.bf16.msra.mxu0 0
  %1844 = vmatprep.subr.bf16.mxu0 0
  %1845 = vmatpush1.bf16.msra.mxu0 0
  %1846 = vmatprep.subr.bf16.mxu0 0
  %1847 = vmatpush1.bf16.msra.mxu0 0
  %1848 = vmatprep.subr.bf16.mxu0 0
  %1849 = vmatpush1.bf16.msra.mxu0 0
  %1850 = vmatprep.subr.bf16.mxu0 0
  %1851 = vmatpush1.bf16.msra.mxu0 0
  %1852 = vmatprep.subr.bf16.mxu0 0
  %1853 = vmatpush1.bf16.msra.mxu0 0
  %1854 = vmatprep.mubr.bf16.mxu0 0
  %1855 = vmatmul.mubr.bf16.gmra.mrb[0].mxu0 %v1738
  %v1856 = vpop.f32.mrb[0].mxu0
  %v1857 = vadd.f32 %v1772, %v1856
  %v1858 = vpop.f32.mrb[0].mxu0
  %v1859 = vpop.f32.mrb[0].mxu0
  %v1860 = vadd.f32 %v1772, %v1859
  %v1861 = vpop.f32.mrb[0].mxu0
  %1862 = vmatprep.mubr.bf16.mxu0 0
  %1863 = vmatmul.mubr.bf16.gmra.mrb[0].mxu0 %v1739
  %v1864 = vpop.f32.mrb[0].mxu0
  %v1865 = vadd.f32 %v1772, %v1864
  %v1866 = vpop.f32.mrb[0].mxu0
  %v1867 = vpop.f32.mrb[0].mxu0
  %v1868 = vadd.f32 %v1772, %v1867
  %v1869 = vpop.f32.mrb[0].mxu0
  %1870 = vmatprep.mubr.bf16.mxu0 0
  %1871 = vmatmul.mubr.bf16.gmra.mrb[0].mxu0 %v1740
  %v1872 = vpop.f32.mrb[0].mxu0
  %v1873 = vadd.f32 %v1772, %v1872
  %v1874 = vpop.f32.mrb[0].mxu0
  %v1875 = vpop.f32.mrb[0].mxu0
  %v1876 = vadd.f32 %v1772, %v1875
  %v1877 = vpop.f32.mrb[0].mxu0
  %1878 = vmatprep.mubr.bf16.mxu0 0
  %1879 = vmatmul.mubr.bf16.gmra.mrb[0].mxu0 %v1741
  %v1880 = vpop.f32.mrb[0].mxu0
  %v1881 = vadd.f32 %v1772, %v1880
  %v1882 = vpop.f32.mrb[0].mxu0
  %v1883 = vpop.f32.mrb[0].mxu0
  %v1884 = vadd.f32 %v1772, %v1883
  %v1885 = vpop.f32.mrb[0].mxu0
  %1886 = vmatprep.mubr.bf16.mxu0 0
  %1887 = vmatmul.mubr.bf16.gmra.mrb[0].mxu0 %v1742
  %v1888 = vpop.f32.mrb[0].mxu0
  %v1889 = vadd.f32 %v1772, %v1888
  %v1890 = vpop.f32.mrb[0].mxu0
  %v1891 = vpop.f32.mrb[0].mxu0
  %v1892 = vadd.f32 %v1772, %v1891
  %v1893 = vpop.f32.mrb[0].mxu0
  %1894 = vmatprep.mubr.bf16.mxu0 0
  %1895 = vmatmul.mubr.bf16.gmra.mrb[0].mxu0 %v1743
  %v1896 = vpop.f32.mrb[0].mxu0
  %v1897 = vadd.f32 %v1772, %v1896
  %v1898 = vpop.f32.mrb[0].mxu0
  %v1899 = vpop.f32.mrb[0].mxu0
  %v1900 = vadd.f32 %v1772, %v1899
  %v1901 = vpop.f32.mrb[0].mxu0
  %1902 = vmatprep.mubr.bf16.mxu0 0
  %1903 = vmatmul.mubr.bf16.gmra.mrb[0].mxu0 %v1744
  %v1904 = vpop.f32.mrb[0].mxu0
  %v1905 = vadd.f32 %v1772, %v1904
  %v1906 = vpop.f32.mrb[0].mxu0
  %v1907 = vpop.f32.mrb[0].mxu0
  %v1908 = vadd.f32 %v1772, %v1907
  %v1909 = vpop.f32.mrb[0].mxu0
  %1910 = vmatprep.mubr.bf16.mxu0 0
  %1911 = vmatmul.mubr.bf16.gmra.mrb[0].mxu0 %v1745
  %v1912 = vpop.f32.mrb[0].mxu0
  %v1913 = vadd.f32 %v1772, %v1912
  %v1914 = vpop.f32.mrb[0].mxu0
  %v1915 = vpop.f32.mrb[0].mxu0
  %v1916 = vadd.f32 %v1772, %v1915
  %v1917 = vpop.f32.mrb[0].mxu0
  %1918 = vmatprep.mubr.bf16.mxu0 0
  %1919 = vmatmul.mubr.bf16.gmra.mrb[0].mxu0 %v1746
  %v1920 = vpop.f32.mrb[0].mxu0
  %v1921 = vadd.f32 %v1772, %v1920
  %v1922 = vpop.f32.mrb[0].mxu0
  %v1923 = vpop.f32.mrb[0].mxu0
  %v1924 = vadd.f32 %v1772, %v1923
  %v1925 = vpop.f32.mrb[0].mxu0
  %1926 = vmatprep.mubr.bf16.mxu0 0
  %1927 = vmatmul.mubr.bf16.gmra.mrb[0].mxu0 %v1747
  %v1928 = vpop.f32.mrb[0].mxu0
  %v1929 = vadd.f32 %v1772, %v1928
  %v1930 = vpop.f32.mrb[0].mxu0
  %v1931 = vpop.f32.mrb[0].mxu0
  %v1932 = vadd.f32 %v1772, %v1931
  %v1933 = vpop.f32.mrb[0].mxu0
  %1934 = vmatprep.mubr.bf16.mxu0 0
  %1935 = vmatmul.mubr.bf16.gmra.mrb[0].mxu0 %v1748
  %v1936 = vpop.f32.mrb[0].mxu0
  %v1937 = vadd.f32 %v1772, %v1936
  %v1938 = vpop.f32.mrb[0].mxu0
  %v1939 = vpop.f32.mrb[0].mxu0
  %v1940 = vadd.f32 %v1772, %v1939
  %v1941 = vpop.f32.mrb[0].mxu0
  %1942 = vmatprep.mubr.bf16.mxu0 0
  %1943 = vmatmul.mubr.bf16.gmra.mrb[0].mxu0 %v1749
  %v1944 = vpop.f32.mrb[0].mxu0
  %v1945 = vadd.f32 %v1772, %v1944
  %v1946 = vpop.f32.mrb[0].mxu0
  %v1947 = vpop.f32.mrb[0].mxu0
  %v1948 = vadd.f32 %v1772, %v1947
  %v1949 = vpop.f32.mrb[0].mxu0
  %1950 = vmatprep.mubr.bf16.mxu0 0
  %1951 = vmatmul.mubr.bf16.gmra.mrb[0].mxu0 %v1750
  %v1952 = vpop.f32.mrb[0].mxu0
  %v1953 = vadd.f32 %v1772, %v1952
  %v1954 = vpop.f32.mrb[0].mxu0
  %v1955 = vpop.f32.mrb[0].mxu0
  %v1956 = vadd.f32 %v1772, %v1955
  %v1957 = vpop.f32.mrb[0].mxu0
  %1958 = vdwg.mxu0
  %v1959 = vxor.u32 %v1857, 2147483648
  %v1960 = vxor.u32 %v1860, 2147483648
  %v1961 = vxor.u32 %v1865, 2147483648
  %v1962 = vxor.u32 %v1868, 2147483648
  %v1963 = vxor.u32 %v1873, 2147483648
  %v1964 = vxor.u32 %v1876, 2147483648
  %v1965 = vxor.u32 %v1881, 2147483648
  %v1966 = vxor.u32 %v1884, 2147483648
  %v1967 = vxor.u32 %v1889, 2147483648
  %v1968 = vxor.u32 %v1892, 2147483648
  %v1969 = vxor.u32 %v1897, 2147483648
  %v1970 = vxor.u32 %v1900, 2147483648
  %v1971 = vxor.u32 %v1905, 2147483648
  %v1972 = vxor.u32 %v1908, 2147483648
  %v1973 = vxor.u32 %v1913, 2147483648
  %v1974 = vxor.u32 %v1916, 2147483648
  %v1975 = vxor.u32 %v1921, 2147483648
  %v1976 = vxor.u32 %v1924, 2147483648
  %v1977 = vxor.u32 %v1929, 2147483648
  %v1978 = vxor.u32 %v1932, 2147483648
  %v1979 = vxor.u32 %v1937, 2147483648
  %v1980 = vxor.u32 %v1940, 2147483648
  %v1981 = vxor.u32 %v1945, 2147483648
  %v1982 = vxor.u32 %v1948, 2147483648
  %v1983 = vxor.u32 %v1953, 2147483648
  %v1984 = vxor.u32 %v1956, 2147483648
  %v1985 = vmul.f32 %v1959, 1.442695
  %v1986 = vpow.pop %v1985
  %v1987 = vmul.f32 %v1960, 1.442695
  %v1988 = vpow.pop %v1987
  %v1989 = vmul.f32 %v1961, 1.442695
  %v1990 = vpow.pop %v1989
  %v1991 = vmul.f32 %v1962, 1.442695
  %v1992 = vpow.pop %v1991
  %v1993 = vmul.f32 %v1963, 1.442695
  %v1994 = vpow.pop %v1993
  %v1995 = vmul.f32 %v1964, 1.442695
  %v1996 = vpow.pop %v1995
  %v1997 = vmul.f32 %v1965, 1.442695
  %v1998 = vpow.pop %v1997
  %v1999 = vmul.f32 %v1966, 1.442695
  %v2000 = vpow.pop %v1999
  %v2001 = vmul.f32 %v1967, 1.442695
  %v2002 = vpow.pop %v2001
  %v2003 = vmul.f32 %v1968, 1.442695
  %v2004 = vpow.pop %v2003
  %v2005 = vmul.f32 %v1969, 1.442695
  %v2006 = vpow.pop %v2005
  %v2007 = vmul.f32 %v1970, 1.442695
  %v2008 = vpow.pop %v2007
  %v2009 = vmul.f32 %v1971, 1.442695
  %v2010 = vpow.pop %v2009
  %v2011 = vmul.f32 %v1972, 1.442695
  %v2012 = vpow.pop %v2011
  %v2013 = vmul.f32 %v1973, 1.442695
  %v2014 = vpow.pop %v2013
  %v2015 = vmul.f32 %v1974, 1.442695
  %v2016 = vpow.pop %v2015
  %v2017 = vmul.f32 %v1975, 1.442695
  %v2018 = vpow.pop %v2017
  %v2019 = vmul.f32 %v1976, 1.442695
  %v2020 = vpow.pop %v2019
  %v2021 = vmul.f32 %v1977, 1.442695
  %v2022 = vpow.pop %v2021
  %v2023 = vmul.f32 %v1978, 1.442695
  %v2024 = vpow.pop %v2023
  %v2025 = vmul.f32 %v1979, 1.442695
  %v2026 = vpow.pop %v2025
  %v2027 = vmul.f32 %v1980, 1.442695
  %v2028 = vpow.pop %v2027
  %v2029 = vmul.f32 %v1981, 1.442695
  %v2030 = vpow.pop %v2029
  %v2031 = vmul.f32 %v1982, 1.442695
  %v2032 = vpow.pop %v2031
  %v2033 = vmul.f32 %v1983, 1.442695
  %v2034 = vpow.pop %v2033
  %v2035 = vmul.f32 %v1984, 1.442695
  %v2036 = vpow.pop %v2035
  %v2037 = vadd.f32 %v1986, 1.0
  %v2038 = vadd.f32 %v1988, 1.0
  %v2039 = vadd.f32 %v1990, 1.0
  %v2040 = vadd.f32 %v1992, 1.0
  %v2041 = vadd.f32 %v1994, 1.0
  %v2042 = vadd.f32 %v1996, 1.0
  %v2043 = vadd.f32 %v1998, 1.0
  %v2044 = vadd.f32 %v2000, 1.0
  %v2045 = vadd.f32 %v2002, 1.0
  %v2046 = vadd.f32 %v2004, 1.0
  %v2047 = vadd.f32 %v2006, 1.0
  %v2048 = vadd.f32 %v2008, 1.0
  %v2049 = vadd.f32 %v2010, 1.0
  %v2050 = vadd.f32 %v2012, 1.0
  %v2051 = vadd.f32 %v2014, 1.0
  %v2052 = vadd.f32 %v2016, 1.0
  %v2053 = vadd.f32 %v2018, 1.0
  %v2054 = vadd.f32 %v2020, 1.0
  %v2055 = vadd.f32 %v2022, 1.0
  %v2056 = vadd.f32 %v2024, 1.0
  %v2057 = vadd.f32 %v2026, 1.0
  %v2058 = vadd.f32 %v2028, 1.0
  %v2059 = vadd.f32 %v2030, 1.0
  %v2060 = vadd.f32 %v2032, 1.0
  %v2061 = vadd.f32 %v2034, 1.0
  %v2062 = vadd.f32 %v2036, 1.0
  %v2063 = vrcp.pop %v2037
  %v2064 = vmul.f32 1.0, %v2063
  %v2065 = vrcp.pop %v2038
  %v2066 = vmul.f32 1.0, %v2065
  %v2067 = vrcp.pop %v2039
  %v2068 = vmul.f32 1.0, %v2067
  %v2069 = vrcp.pop %v2040
  %v2070 = vmul.f32 1.0, %v2069
  %v2071 = vrcp.pop %v2041
  %v2072 = vmul.f32 1.0, %v2071
  %v2073 = vrcp.pop %v2042
  %v2074 = vmul.f32 1.0, %v2073
  %v2075 = vrcp.pop %v2043
  %v2076 = vmul.f32 1.0, %v2075
  %v2077 = vrcp.pop %v2044
  %v2078 = vmul.f32 1.0, %v2077
  %v2079 = vrcp.pop %v2045
  %v2080 = vmul.f32 1.0, %v2079
  %v2081 = vrcp.pop %v2046
  %v2082 = vmul.f32 1.0, %v2081
  %v2083 = vrcp.pop %v2047
  %v2084 = vmul.f32 1.0, %v2083
  %v2085 = vrcp.pop %v2048
  %v2086 = vmul.f32 1.0, %v2085
  %v2087 = vrcp.pop %v2049
  %v2088 = vmul.f32 1.0, %v2087
  %v2089 = vrcp.pop %v2050
  %v2090 = vmul.f32 1.0, %v2089
  %v2091 = vrcp.pop %v2051
  %v2092 = vmul.f32 1.0, %v2091
  %v2093 = vrcp.pop %v2052
  %v2094 = vmul.f32 1.0, %v2093
  %v2095 = vrcp.pop %v2053
  %v2096 = vmul.f32 1.0, %v2095
  %v2097 = vrcp.pop %v2054
  %v2098 = vmul.f32 1.0, %v2097
  %v2099 = vrcp.pop %v2055
  %v2100 = vmul.f32 1.0, %v2099
  %v2101 = vrcp.pop %v2056
  %v2102 = vmul.f32 1.0, %v2101
  %v2103 = vrcp.pop %v2057
  %v2104 = vmul.f32 1.0, %v2103
  %v2105 = vrcp.pop %v2058
  %v2106 = vmul.f32 1.0, %v2105
  %v2107 = vrcp.pop %v2059
  %v2108 = vmul.f32 1.0, %v2107
  %v2109 = vrcp.pop %v2060
  %v2110 = vmul.f32 1.0, %v2109
  %v2111 = vrcp.pop %v2061
  %v2112 = vmul.f32 1.0, %v2111
  %v2113 = vrcp.pop %v2062
  %v2114 = vmul.f32 1.0, %v2113
  %2115 = vst [vmem:[%s12] sm:$0xff] %v2064
  %2116 = vst [vmem:[%s12 + $0x8] sm:$0xff] %v2066
  %2117 = vst [vmem:[%s12 + $0x10] sm:$0xff] %v2068
  %2118 = vst [vmem:[%s12 + $0x18] sm:$0xff] %v2070
  %2119 = vst [vmem:[%s12 + $0x20] sm:$0xff] %v2072
  %2120 = vst [vmem:[%s12 + $0x28] sm:$0xff] %v2074
  %2121 = vst [vmem:[%s12 + $0x30] sm:$0xff] %v2076
  %2122 = vst [vmem:[%s12 + $0x38] sm:$0xff] %v2078
  %2123 = vst [vmem:[%s12 + $0x40] sm:$0xff] %v2080
  %2124 = vst [vmem:[%s12 + $0x48] sm:$0xff] %v2082
  %2125 = vst [vmem:[%s12 + $0x50] sm:$0xff] %v2084
  %2126 = vst [vmem:[%s12 + $0x58] sm:$0xff] %v2086
  %2127 = vst [vmem:[%s12 + $0x60] sm:$0xff] %v2088
  %2128 = vst [vmem:[%s12 + $0x68] sm:$0xff] %v2090
  %2129 = vst [vmem:[%s12 + $0x70] sm:$0xff] %v2092
  %2130 = vst [vmem:[%s12 + $0x78] sm:$0xff] %v2094
  %2131 = vst [vmem:[%s12 + $0x80] sm:$0xff] %v2096
  %2132 = vst [vmem:[%s12 + $0x88] sm:$0xff] %v2098
  %2133 = vst [vmem:[%s12 + $0x90] sm:$0xff] %v2100
  %2134 = vst [vmem:[%s12 + $0x98] sm:$0xff] %v2102
  %2135 = vst [vmem:[%s12 + $0xa0] sm:$0xff] %v2104
  %2136 = vst [vmem:[%s12 + $0xa8] sm:$0xff] %v2106
  %2137 = vst [vmem:[%s12 + $0xb0] sm:$0xff] %v2108
  %2138 = vst [vmem:[%s12 + $0xb8] sm:$0xff] %v2110
  %2139 = vst [vmem:[%s12 + $0xc0] sm:$0xff] %v2112
  %2140 = vst [vmem:[%s12 + $0xc8] sm:$0xff] %v2114
  // Predicated region
  $region50: #{_bmn_ddi_forward_impl.1} parent=0 // pred_check
    _
  $region51: #{_bmn_ddi_forward_impl.1} parent=0 // pred_check_branch
    %2142 = sbr.rel (0) target = $region53
  $region52: #{_bmn_ddi_forward_impl.1} parent=0 // pred_region
    _
  $region53: #{_bmn_ddi_forward_impl.1} parent=0 // pred_fallthru
    _
  // Predicated region
  $region54: #{_bmn_ddi_forward_impl.1} parent=0 // pred_check
    _
  $region55: #{_bmn_ddi_forward_impl.1} parent=0 // pred_check_branch
    %2144 = sbr.rel (0) target = $region57
  $region56: #{_bmn_ddi_forward_impl.1} parent=0 // pred_region
    _
  $region57: #{_bmn_ddi_forward_impl.1} parent=0 // pred_fallthru
    _

</llo_original>
